<compile_context>
chip_gen: v6e
topology: v6e:2x2x1
jax: 0.10.0
libtpu: 0.0.40
codegen_flags: <defaults>
</compile_context>

<pallas_src>
import functools

import jax
import jax.numpy as jnp
from jax import lax
from jax.experimental import pallas as pl
from jax.experimental.pallas import tpu as pltpu


def lstm_chunk_kernel(maxlen_ref, gx_ref, whh_ref, seqlen_ref,
                      out_ref, final_ref, h_scr, c_scr, *,
                      time_chunk, hidden):
    """Runs `time_chunk` LSTM steps per grid iteration.

    maxlen_ref: (1,)        SMEM  max(seq_len) (scalar prefetch)
    gx_ref:     (Tc, B, 4H) VMEM  pre-activations x@W_ih^T + b (time-major)
    whh_ref:    (H, 4H)     VMEM  W_hh^T (constant block index -> resident)
    seqlen_ref: (B, 1)      VMEM  int32 sequence lengths
    out_ref:    (B, Tc, H)        per-chunk output block (batch-first)
    final_ref:  (B, H)            resident output: final hidden state
    h_scr/c_scr:(B, H)      VMEM  recurrent state carried across chunks
    """
    Tc, H = time_chunk, hidden
    chunk = pl.program_id(0)
    chunk_start = chunk * Tc
    max_len = maxlen_ref[0]

    @pl.when(chunk == 0)
    def _init():
        h_scr[...] = jnp.zeros_like(h_scr)
        c_scr[...] = jnp.zeros_like(c_scr)

    # Chunks where every sequence has already finished: zero output, skip compute.
    @pl.when(chunk_start >= max_len)
    def _padded():
        out_ref[...] = jnp.zeros_like(out_ref)

    @pl.when(chunk_start < max_len)
    def _compute():
        seqlen = seqlen_ref[...]          # (B, 1), loaded once per chunk
        whh = whh_ref[...]                # (H, 4H), resident

        def step(tt, carry):
            h, c = carry
            t = chunk_start + tt
            # gates = (x W_ih^T + b) + h W_hh^T   -> (B, 4H), order i, f, g, o
            gates = gx_ref[tt] + jnp.dot(h, whh,
                                         preferred_element_type=jnp.float32)
            i_g = jax.nn.sigmoid(gates[:, 0 * H:1 * H])
            f_g = jax.nn.sigmoid(gates[:, 1 * H:2 * H])
            g_g = jnp.tanh(gates[:, 2 * H:3 * H])
            o_g = jax.nn.sigmoid(gates[:, 3 * H:4 * H])
            c_new = f_g * c + i_g * g_g
            h_new = o_g * jnp.tanh(c_new)

            # packed-sequence semantics: freeze state / zero output past seq_len
            mask = t < seqlen             # (B, 1) bool
            h = jnp.where(mask, h_new, h)
            c = jnp.where(mask, c_new, c)
            out_ref[:, pl.ds(tt, 1), :] = (
                jnp.where(mask, h_new, 0.0)[:, None, :].astype(out_ref.dtype))
            return h, c

        h_fin, c_fin = lax.fori_loop(0, Tc, step, (h_scr[...], c_scr[...]),
                                     unroll=min(Tc, 8))
        h_scr[...] = h_fin
        c_scr[...] = c_fin

    @pl.when(chunk == pl.num_programs(0) - 1)
    def _finalize():
        final_ref[...] = h_scr[...].astype(final_ref.dtype)


def rnn_encoder_forward(x_embed, seq_len, params, *, time_chunk=64):
    """x_embed: (B, T, E) float32 (batch-first, like the PyTorch module)."""
    w_ih, w_hh, b_ih, b_hh = params           # (4H,E), (4H,H), (4H,), (4H,)
    B, T, E = x_embed.shape
    H = w_hh.shape[1]
    G = 4 * H

    # Time chunking: Tc must be a multiple of 8 or equal the (padded) time dim.
    assert time_chunk % 8 == 0
    if T <= time_chunk:
        Tc, T_pad = T, T
    else:
        Tc = time_chunk
        T_pad = ((T + Tc - 1) // Tc) * Tc

    # Hoisted input projection: one big matmul instead of T tiny (B,E)x(E,4H) ones.
    # Emitted time-major so the kernel reads whole (B, 4H) tiles per step.
    gates_x = jnp.einsum('bte,ge->tbg', x_embed.astype(jnp.float32),
                         w_ih.astype(jnp.float32)) + (b_ih + b_hh)
    if T_pad != T:
        gates_x = jnp.pad(gates_x, ((0, T_pad - T), (0, 0), (0, 0)))

    whh_t = jnp.transpose(w_hh).astype(jnp.float32)          # (H, 4H)
    seq_len_i = jnp.minimum(seq_len.astype(jnp.int32), T)
    seqlen2d = seq_len_i.reshape(B, 1)
    maxlen = jnp.max(seq_len_i, keepdims=True)                # (1,) -> SMEM prefetch

    kernel = functools.partial(lstm_chunk_kernel, time_chunk=Tc, hidden=H)

    out_pad, final = pl.pallas_call(
        kernel,
        out_shape=(
            jax.ShapeDtypeStruct((B, T_pad, H), x_embed.dtype),
            jax.ShapeDtypeStruct((B, H), x_embed.dtype),
        ),
        grid_spec=pltpu.PrefetchScalarGridSpec(
            num_scalar_prefetch=1,
            grid=(T_pad // Tc,),
            in_specs=[
                pl.BlockSpec((Tc, B, G), lambda c, ml: (c, 0, 0)),   # gates_x chunk
                pl.BlockSpec((H, G), lambda c, ml: (0, 0)),          # W_hh^T
                pl.BlockSpec((B, 1), lambda c, ml: (0, 0)),          # seq_len
            ],
            out_specs=[
                pl.BlockSpec((B, Tc, H), lambda c, ml: (0, c, 0)),   # per-step out
                pl.BlockSpec((B, H), lambda c, ml: (0, 0)),          # final hidden
            ],
            scratch_shapes=[
                pltpu.VMEM((B, H), jnp.float32),    # h
                pltpu.VMEM((B, H), jnp.float32),    # c
            ],
        ),
        compiler_params=pltpu.CompilerParams(
            dimension_semantics=("arbitrary",)),    # time recurrence is sequential
    )(maxlen, gates_x, whh_t, seqlen2d)

    output = out_pad if T_pad == T else out_pad[:, :T, :]
    # num_layers=1, unidirectional: torch.cat([h_n[0]], dim=-1) == h_n[0]
    return output, final


def reference_forward(x_embed, seq_len, params):
    """Pure-JAX reference (same math, lax.scan) for correctness check."""
    w_ih, w_hh, b_ih, b_hh = params
    B, T, E = x_embed.shape
    H = w_hh.shape[1]

    def step(carry, xs):
        h, c = carry
        x_t, t = xs
        gates = x_t @ w_ih.T + h @ w_hh.T + b_ih + b_hh
        i = jax.nn.sigmoid(gates[:, :H])
        f = jax.nn.sigmoid(gates[:, H:2 * H])
        g = jnp.tanh(gates[:, 2 * H:3 * H])
        o = jax.nn.sigmoid(gates[:, 3 * H:])
        c_new = f * c + i * g
        h_new = o * jnp.tanh(c_new)
        mask = (t < seq_len)[:, None]
        h = jnp.where(mask, h_new, h)
        c = jnp.where(mask, c_new, c)
        out = jnp.where(mask, h_new, 0.0)
        return (h, c), out

    init = (jnp.zeros((B, H), jnp.float32), jnp.zeros((B, H), jnp.float32))
    (h_fin, _), outs = lax.scan(
        step, init, (jnp.transpose(x_embed, (1, 0, 2)), jnp.arange(T)))
    return jnp.transpose(outs, (1, 0, 2)), h_fin


if __name__ == "__main__":
    def make_case(key, B, T, E, H, lens):
        kx, k1, k2, k3, k4 = jax.random.split(key, 5)
        x = jax.random.normal(kx, (B, T, E), dtype=jnp.float32)
        bound = 1.0 / (H ** 0.5)   # PyTorch LSTM init range, deterministic here
        w_ih = jax.random.uniform(k1, (4 * H, E), jnp.float32, -bound, bound)
        w_hh = jax.random.uniform(k2, (4 * H, H), jnp.float32, -bound, bound)
        b_ih = jax.random.uniform(k3, (4 * H,), jnp.float32, -bound, bound)
        b_hh = jax.random.uniform(k4, (4 * H,), jnp.float32, -bound, bound)
        return x, jnp.array(lens, jnp.int32), (w_ih, w_hh, b_ih, b_hh)

    # Case 1: small module-like shapes, single chunk (Tc == T).
    B, T, E, H = 2, 8, 32, 32
    x, sl, params = make_case(jax.random.PRNGKey(0), B, T, E, H, [8, 5])
    out, fin = jax.jit(rnn_encoder_forward)(x, sl, params)
    out = jax.block_until_ready(out)
    fin = jax.block_until_ready(fin)
    ref_out, ref_fin = reference_forward(x, sl, params)
    assert out.shape == (B, T, H) and fin.shape == (B, H)
    assert jnp.allclose(out, ref_out, atol=1e-3, rtol=1e-3)
    assert jnp.allclose(fin, ref_fin, atol=1e-3, rtol=1e-3)

    # Case 2: multi-chunk path with ragged T (time padding) and a fully-padded
    # trailing chunk (exercises the skip branch and the finalize-on-last-chunk).
    B, T, E, H = 2, 37, 32, 32
    x, sl, params = make_case(jax.random.PRNGKey(1), B, T, E, H, [20, 5])
    fwd = jax.jit(functools.partial(rnn_encoder_forward, time_chunk=8))
    out, fin = fwd(x, sl, params)
    out = jax.block_until_ready(out)
    fin = jax.block_until_ready(fin)
    ref_out, ref_fin = reference_forward(x, sl, params)
    assert out.shape == (B, T, H) and fin.shape == (B, H)
    assert jnp.allclose(out, ref_out, atol=1e-3, rtol=1e-3)
    assert jnp.allclose(fin, ref_fin, atol=1e-3, rtol=1e-3)

    print("KERNEL_OK")
</pallas_src>

<mosaic_0001>
module attributes {stable_mosaic.version = 11 : i64} {
  func.func @lstm_chunk_kernel(%arg0: i32, %arg1: memref<1xi32, #tpu.memory_space<smem>>, %arg2: memref<8x2x128xf32, #tpu.memory_space<vmem>>, %arg3: memref<32x128xf32, #tpu.memory_space<vmem>>, %arg4: memref<2x1xi32, #tpu.memory_space<vmem>>, %arg5: memref<2x8x32xf32, #tpu.memory_space<vmem>>, %arg6: memref<2x32xf32, #tpu.memory_space<vmem>>, %arg7: memref<2x32xf32, #tpu.memory_space<vmem>>, %arg8: memref<2x32xf32, #tpu.memory_space<vmem>>) attributes {dimension_semantics = [#tpu.dimension_semantics<arbitrary>], iteration_bounds = array<i64: 1>, scalar_prefetch = 1 : i64, scratch_operands = 2 : i64, tpu.core_type = #tpu.core_type<tc>, window_params = [{transform_indices = @transform_0, window_bounds = array<i64: 8, 2, 128>}, {pipeline_mode = #tpu.pipeline_mode<synchronous>, transform_indices = @transform_1, window_bounds = array<i64: 32, 128>}, {pipeline_mode = #tpu.pipeline_mode<synchronous>, transform_indices = @transform_2, window_bounds = array<i64: 2, 1>}, {transform_indices = @transform_3, window_bounds = array<i64: 2, 8, 32>}, {pipeline_mode = #tpu.pipeline_mode<synchronous>, transform_indices = @transform_4, window_bounds = array<i64: 2, 32>}]} {
    %c8_i32 = arith.constant 8 : i32
    %0 = arith.muli %arg0, %c8_i32 : i32
    %c0 = arith.constant 0 : index
    %1 = memref.load %arg1[%c0] : memref<1xi32, #tpu.memory_space<smem>>
    %c0_i32 = arith.constant 0 : i32
    %2 = arith.cmpi eq, %arg0, %c0_i32 : i32
    %3 = arith.extui %2 : i1 to i32
    %c0_i32_0 = arith.constant 0 : i32
    %4 = arith.cmpi ne, %3, %c0_i32_0 : i32
    scf.if %4 {
      %cst = arith.constant 0.000000e+00 : f32
      %14 = vector.broadcast %cst : f32 to vector<2x32xf32>
      %c0_5 = arith.constant 0 : index
      %c0_6 = arith.constant 0 : index
      %15 = vector.load %arg7[%c0_5, %c0_6] : memref<2x32xf32, #tpu.memory_space<vmem>>, vector<2x32xf32>
      tpu.vector_store %arg7[%c0_5, %c0_6], %14 {strides = array<i32>} : memref<2x32xf32, #tpu.memory_space<vmem>>, vector<2x32xf32>,
      %cst_7 = arith.constant 0.000000e+00 : f32
      %16 = vector.broadcast %cst_7 : f32 to vector<2x32xf32>
      %c0_8 = arith.constant 0 : index
      %c0_9 = arith.constant 0 : index
      %17 = vector.load %arg8[%c0_8, %c0_9] : memref<2x32xf32, #tpu.memory_space<vmem>>, vector<2x32xf32>
      tpu.vector_store %arg8[%c0_8, %c0_9], %16 {strides = array<i32>} : memref<2x32xf32, #tpu.memory_space<vmem>>, vector<2x32xf32>,
    } else {
    }
    %5 = arith.cmpi sge, %0, %1 : i32
    %6 = arith.extui %5 : i1 to i32
    %c0_i32_1 = arith.constant 0 : i32
    %7 = arith.cmpi ne, %6, %c0_i32_1 : i32
    scf.if %7 {
      %cst = arith.constant 0.000000e+00 : f32
      %14 = vector.broadcast %cst : f32 to vector<2x8x32xf32>
      %c0_5 = arith.constant 0 : index
      %c0_6 = arith.constant 0 : index
      %c0_7 = arith.constant 0 : index
      %15 = vector.load %arg5[%c0_5, %c0_6, %c0_7] : memref<2x8x32xf32, #tpu.memory_space<vmem>>, vector<2x8x32xf32>
      tpu.vector_store %arg5[%c0_5, %c0_6, %c0_7], %14 {strides = array<i32>} : memref<2x8x32xf32, #tpu.memory_space<vmem>>, vector<2x8x32xf32>,
    } else {
    }
    %8 = arith.cmpi slt, %0, %1 : i32
    %9 = arith.extui %8 : i1 to i32
    %c0_i32_2 = arith.constant 0 : i32
    %10 = arith.cmpi ne, %9, %c0_i32_2 : i32
    scf.if %10 {
      %c0_5 = arith.constant 0 : index
      %c0_6 = arith.constant 0 : index
      %14 = vector.load %arg4[%c0_5, %c0_6] : memref<2x1xi32, #tpu.memory_space<vmem>>, vector<2x1xi32>
      %c0_7 = arith.constant 0 : index
      %c0_8 = arith.constant 0 : index
      %15 = vector.load %arg3[%c0_7, %c0_8] : memref<32x128xf32, #tpu.memory_space<vmem>>, vector<32x128xf32>
      %c0_9 = arith.constant 0 : index
      %c0_10 = arith.constant 0 : index
      %16 = vector.load %arg7[%c0_9, %c0_10] : memref<2x32xf32, #tpu.memory_space<vmem>>, vector<2x32xf32>
      %c0_11 = arith.constant 0 : index
      %c0_12 = arith.constant 0 : index
      %17 = vector.load %arg8[%c0_11, %c0_12] : memref<2x32xf32, #tpu.memory_space<vmem>>, vector<2x32xf32>
      %c0_i32_13 = arith.constant 0 : i32
      %18 = arith.addi %0, %c0_i32_13 : i32
      %19 = arith.index_cast %c0_i32_13 : i32 to index
      %c0_14 = arith.constant 0 : index
      %c0_15 = arith.constant 0 : index
      %20 = vector.load %arg2[%19, %c0_14, %c0_15] : memref<8x2x128xf32, #tpu.memory_space<vmem>>, vector<1x2x128xf32>
      %21 = vector.shape_cast %20 : vector<1x2x128xf32> to vector<2x128xf32>
      %cst = arith.constant dense<0.000000e+00> : vector<2x128xf32>
      %22 = tpu.matmul %16, %15, %cst {dimension_numbers = #tpu.dot_dimension_numbers<[1], [0], [0], [1], [0, 0, 1, 1], [], []>} : vector<2x32xf32>, vector<32x128xf32>, vector<2x128xf32> -> vector<2x128xf32>
      %23 = arith.addf %21, %22 : vector<2x128xf32>
      %24 = vector.extract_strided_slice %23 {offsets = [0, 0], sizes = [2, 32], strides = [1, 1]} : vector<2x128xf32> to vector<2x32xf32>
      %25 = arith.negf %24 : vector<2x32xf32>
      %26 = math.exp %25 : vector<2x32xf32>
      %cst_16 = arith.constant 1.000000e+00 : f32
      %27 = vector.broadcast %cst_16 : f32 to vector<2x32xf32>
      %28 = arith.addf %27, %26 : vector<2x32xf32>
      %29 = arith.divf %27, %28 : vector<2x32xf32>
      %30 = vector.extract_strided_slice %23 {offsets = [0, 32], sizes = [2, 32], strides = [1, 1]} : vector<2x128xf32> to vector<2x32xf32>
      %31 = arith.negf %30 : vector<2x32xf32>
      %32 = math.exp %31 : vector<2x32xf32>
      %cst_17 = arith.constant 1.000000e+00 : f32
      %33 = vector.broadcast %cst_17 : f32 to vector<2x32xf32>
      %34 = arith.addf %33, %32 : vector<2x32xf32>
      %35 = arith.divf %33, %34 : vector<2x32xf32>
      %36 = vector.extract_strided_slice %23 {offsets = [0, 64], sizes = [2, 32], strides = [1, 1]} : vector<2x128xf32> to vector<2x32xf32>
      %37 = math.tanh %36 : vector<2x32xf32>
      %38 = vector.extract_strided_slice %23 {offsets = [0, 96], sizes = [2, 32], strides = [1, 1]} : vector<2x128xf32> to vector<2x32xf32>
      %39 = arith.negf %38 : vector<2x32xf32>
      %40 = math.exp %39 : vector<2x32xf32>
      %cst_18 = arith.constant 1.000000e+00 : f32
      %41 = vector.broadcast %cst_18 : f32 to vector<2x32xf32>
      %42 = arith.addf %41, %40 : vector<2x32xf32>
      %43 = arith.divf %41, %42 : vector<2x32xf32>
      %44 = arith.mulf %35, %17 : vector<2x32xf32>
      %45 = arith.mulf %29, %37 : vector<2x32xf32>
      %46 = arith.addf %44, %45 : vector<2x32xf32>
      %47 = math.tanh %46 : vector<2x32xf32>
      %48 = arith.mulf %43, %47 : vector<2x32xf32>
      %49 = vector.broadcast %18 : i32 to vector<2x1xi32>
      %50 = arith.cmpi slt, %49, %14 : vector<2x1xi32>
      %51 = vector.shape_cast %50 : vector<2x1xi1> to vector<2x1xi1>
      %52 = vector.broadcast %51 : vector<2x1xi1> to vector<2x32xi1>
      %53 = arith.select %52, %48, %16 : vector<2x32xi1>, vector<2x32xf32>
      %54 = vector.shape_cast %50 : vector<2x1xi1> to vector<2x1xi1>
      %55 = vector.broadcast %54 : vector<2x1xi1> to vector<2x32xi1>
      %56 = arith.select %55, %46, %17 : vector<2x32xi1>, vector<2x32xf32>
      %cst_19 = arith.constant 0.000000e+00 : f32
      %57 = vector.shape_cast %50 : vector<2x1xi1> to vector<2x1xi1>
      %58 = vector.broadcast %57 : vector<2x1xi1> to vector<2x32xi1>
      %59 = vector.broadcast %cst_19 : f32 to vector<2x32xf32>
      %60 = arith.select %58, %48, %59 : vector<2x32xi1>, vector<2x32xf32>
      %61 = vector.shape_cast %60 : vector<2x32xf32> to vector<2x1x32xf32>
      %c0_20 = arith.constant 0 : index
      %62 = arith.index_cast %c0_i32_13 : i32 to index
      %c0_21 = arith.constant 0 : index
      %63 = vector.load %arg5[%c0_20, %62, %c0_21] : memref<2x8x32xf32, #tpu.memory_space<vmem>>, vector<2x1x32xf32>
      tpu.vector_store %arg5[%c0_20, %62, %c0_21], %61 {strides = array<i32>} : memref<2x8x32xf32, #tpu.memory_space<vmem>>, vector<2x1x32xf32>,
      %c1_i32 = arith.constant 1 : i32
      %64 = arith.addi %0, %c1_i32 : i32
      %65 = arith.index_cast %c1_i32 : i32 to index
      %c0_22 = arith.constant 0 : index
      %c0_23 = arith.constant 0 : index
      %66 = vector.load %arg2[%65, %c0_22, %c0_23] : memref<8x2x128xf32, #tpu.memory_space<vmem>>, vector<1x2x128xf32>
      %67 = vector.shape_cast %66 : vector<1x2x128xf32> to vector<2x128xf32>
      %cst_24 = arith.constant dense<0.000000e+00> : vector<2x128xf32>
      %68 = tpu.matmul %53, %15, %cst_24 {dimension_numbers = #tpu.dot_dimension_numbers<[1], [0], [0], [1], [0, 0, 1, 1], [], []>} : vector<2x32xf32>, vector<32x128xf32>, vector<2x128xf32> -> vector<2x128xf32>
      %69 = arith.addf %67, %68 : vector<2x128xf32>
      %70 = vector.extract_strided_slice %69 {offsets = [0, 0], sizes = [2, 32], strides = [1, 1]} : vector<2x128xf32> to vector<2x32xf32>
      %71 = arith.negf %70 : vector<2x32xf32>
      %72 = math.exp %71 : vector<2x32xf32>
      %cst_25 = arith.constant 1.000000e+00 : f32
      %73 = vector.broadcast %cst_25 : f32 to vector<2x32xf32>
      %74 = arith.addf %73, %72 : vector<2x32xf32>
      %75 = arith.divf %73, %74 : vector<2x32xf32>
      %76 = vector.extract_strided_slice %69 {offsets = [0, 32], sizes = [2, 32], strides = [1, 1]} : vector<2x128xf32> to vector<2x32xf32>
      %77 = arith.negf %76 : vector<2x32xf32>
      %78 = math.exp %77 : vector<2x32xf32>
      %cst_26 = arith.constant 1.000000e+00 : f32
      %79 = vector.broadcast %cst_26 : f32 to vector<2x32xf32>
      %80 = arith.addf %79, %78 : vector<2x32xf32>
      %81 = arith.divf %79, %80 : vector<2x32xf32>
      %82 = vector.extract_strided_slice %69 {offsets = [0, 64], sizes = [2, 32], strides = [1, 1]} : vector<2x128xf32> to vector<2x32xf32>
      %83 = math.tanh %82 : vector<2x32xf32>
      %84 = vector.extract_strided_slice %69 {offsets = [0, 96], sizes = [2, 32], strides = [1, 1]} : vector<2x128xf32> to vector<2x32xf32>
      %85 = arith.negf %84 : vector<2x32xf32>
      %86 = math.exp %85 : vector<2x32xf32>
      %cst_27 = arith.constant 1.000000e+00 : f32
      %87 = vector.broadcast %cst_27 : f32 to vector<2x32xf32>
      %88 = arith.addf %87, %86 : vector<2x32xf32>
      %89 = arith.divf %87, %88 : vector<2x32xf32>
      %90 = arith.mulf %81, %56 : vector<2x32xf32>
      %91 = arith.mulf %75, %83 : vector<2x32xf32>
      %92 = arith.addf %90, %91 : vector<2x32xf32>
      %93 = math.tanh %92 : vector<2x32xf32>
      %94 = arith.mulf %89, %93 : vector<2x32xf32>
      %95 = vector.broadcast %64 : i32 to vector<2x1xi32>
      %96 = arith.cmpi slt, %95, %14 : vector<2x1xi32>
      %97 = vector.shape_cast %96 : vector<2x1xi1> to vector<2x1xi1>
      %98 = vector.broadcast %97 : vector<2x1xi1> to vector<2x32xi1>
      %99 = arith.select %98, %94, %53 : vector<2x32xi1>, vector<2x32xf32>
      %100 = vector.shape_cast %96 : vector<2x1xi1> to vector<2x1xi1>
      %101 = vector.broadcast %100 : vector<2x1xi1> to vector<2x32xi1>
      %102 = arith.select %101, %92, %56 : vector<2x32xi1>, vector<2x32xf32>
      %cst_28 = arith.constant 0.000000e+00 : f32
      %103 = vector.shape_cast %96 : vector<2x1xi1> to vector<2x1xi1>
      %104 = vector.broadcast %103 : vector<2x1xi1> to vector<2x32xi1>
      %105 = vector.broadcast %cst_28 : f32 to vector<2x32xf32>
      %106 = arith.select %104, %94, %105 : vector<2x32xi1>, vector<2x32xf32>
      %107 = vector.shape_cast %106 : vector<2x32xf32> to vector<2x1x32xf32>
      %c0_29 = arith.constant 0 : index
      %108 = arith.index_cast %c1_i32 : i32 to index
      %c0_30 = arith.constant 0 : index
      %109 = vector.load %arg5[%c0_29, %108, %c0_30] : memref<2x8x32xf32, #tpu.memory_space<vmem>>, vector<2x1x32xf32>
      tpu.vector_store %arg5[%c0_29, %108, %c0_30], %107 {strides = array<i32>} : memref<2x8x32xf32, #tpu.memory_space<vmem>>, vector<2x1x32xf32>,
      %c2_i32 = arith.constant 2 : i32
      %110 = arith.addi %0, %c2_i32 : i32
      %111 = arith.index_cast %c2_i32 : i32 to index
      %c0_31 = arith.constant 0 : index
      %c0_32 = arith.constant 0 : index
      %112 = vector.load %arg2[%111, %c0_31, %c0_32] : memref<8x2x128xf32, #tpu.memory_space<vmem>>, vector<1x2x128xf32>
      %113 = vector.shape_cast %112 : vector<1x2x128xf32> to vector<2x128xf32>
      %cst_33 = arith.constant dense<0.000000e+00> : vector<2x128xf32>
      %114 = tpu.matmul %99, %15, %cst_33 {dimension_numbers = #tpu.dot_dimension_numbers<[1], [0], [0], [1], [0, 0, 1, 1], [], []>} : vector<2x32xf32>, vector<32x128xf32>, vector<2x128xf32> -> vector<2x128xf32>
      %115 = arith.addf %113, %114 : vector<2x128xf32>
      %116 = vector.extract_strided_slice %115 {offsets = [0, 0], sizes = [2, 32], strides = [1, 1]} : vector<2x128xf32> to vector<2x32xf32>
      %117 = arith.negf %116 : vector<2x32xf32>
      %118 = math.exp %117 : vector<2x32xf32>
      %cst_34 = arith.constant 1.000000e+00 : f32
      %119 = vector.broadcast %cst_34 : f32 to vector<2x32xf32>
      %120 = arith.addf %119, %118 : vector<2x32xf32>
      %121 = arith.divf %119, %120 : vector<2x32xf32>
      %122 = vector.extract_strided_slice %115 {offsets = [0, 32], sizes = [2, 32], strides = [1, 1]} : vector<2x128xf32> to vector<2x32xf32>
      %123 = arith.negf %122 : vector<2x32xf32>
      %124 = math.exp %123 : vector<2x32xf32>
      %cst_35 = arith.constant 1.000000e+00 : f32
      %125 = vector.broadcast %cst_35 : f32 to vector<2x32xf32>
      %126 = arith.addf %125, %124 : vector<2x32xf32>
      %127 = arith.divf %125, %126 : vector<2x32xf32>
      %128 = vector.extract_strided_slice %115 {offsets = [0, 64], sizes = [2, 32], strides = [1, 1]} : vector<2x128xf32> to vector<2x32xf32>
      %129 = math.tanh %128 : vector<2x32xf32>
      %130 = vector.extract_strided_slice %115 {offsets = [0, 96], sizes = [2, 32], strides = [1, 1]} : vector<2x128xf32> to vector<2x32xf32>
      %131 = arith.negf %130 : vector<2x32xf32>
      %132 = math.exp %131 : vector<2x32xf32>
      %cst_36 = arith.constant 1.000000e+00 : f32
      %133 = vector.broadcast %cst_36 : f32 to vector<2x32xf32>
      %134 = arith.addf %133, %132 : vector<2x32xf32>
      %135 = arith.divf %133, %134 : vector<2x32xf32>
      %136 = arith.mulf %127, %102 : vector<2x32xf32>
      %137 = arith.mulf %121, %129 : vector<2x32xf32>
      %138 = arith.addf %136, %137 : vector<2x32xf32>
      %139 = math.tanh %138 : vector<2x32xf32>
      %140 = arith.mulf %135, %139 : vector<2x32xf32>
      %141 = vector.broadcast %110 : i32 to vector<2x1xi32>
      %142 = arith.cmpi slt, %141, %14 : vector<2x1xi32>
      %143 = vector.shape_cast %142 : vector<2x1xi1> to vector<2x1xi1>
      %144 = vector.broadcast %143 : vector<2x1xi1> to vector<2x32xi1>
      %145 = arith.select %144, %140, %99 : vector<2x32xi1>, vector<2x32xf32>
      %146 = vector.shape_cast %142 : vector<2x1xi1> to vector<2x1xi1>
      %147 = vector.broadcast %146 : vector<2x1xi1> to vector<2x32xi1>
      %148 = arith.select %147, %138, %102 : vector<2x32xi1>, vector<2x32xf32>
      %cst_37 = arith.constant 0.000000e+00 : f32
      %149 = vector.shape_cast %142 : vector<2x1xi1> to vector<2x1xi1>
      %150 = vector.broadcast %149 : vector<2x1xi1> to vector<2x32xi1>
      %151 = vector.broadcast %cst_37 : f32 to vector<2x32xf32>
      %152 = arith.select %150, %140, %151 : vector<2x32xi1>, vector<2x32xf32>
      %153 = vector.shape_cast %152 : vector<2x32xf32> to vector<2x1x32xf32>
      %c0_38 = arith.constant 0 : index
      %154 = arith.index_cast %c2_i32 : i32 to index
      %c0_39 = arith.constant 0 : index
      %155 = vector.load %arg5[%c0_38, %154, %c0_39] : memref<2x8x32xf32, #tpu.memory_space<vmem>>, vector<2x1x32xf32>
      tpu.vector_store %arg5[%c0_38, %154, %c0_39], %153 {strides = array<i32>} : memref<2x8x32xf32, #tpu.memory_space<vmem>>, vector<2x1x32xf32>,
      %c3_i32 = arith.constant 3 : i32
      %156 = arith.addi %0, %c3_i32 : i32
      %157 = arith.index_cast %c3_i32 : i32 to index
      %c0_40 = arith.constant 0 : index
      %c0_41 = arith.constant 0 : index
      %158 = vector.load %arg2[%157, %c0_40, %c0_41] : memref<8x2x128xf32, #tpu.memory_space<vmem>>, vector<1x2x128xf32>
      %159 = vector.shape_cast %158 : vector<1x2x128xf32> to vector<2x128xf32>
      %cst_42 = arith.constant dense<0.000000e+00> : vector<2x128xf32>
      %160 = tpu.matmul %145, %15, %cst_42 {dimension_numbers = #tpu.dot_dimension_numbers<[1], [0], [0], [1], [0, 0, 1, 1], [], []>} : vector<2x32xf32>, vector<32x128xf32>, vector<2x128xf32> -> vector<2x128xf32>
      %161 = arith.addf %159, %160 : vector<2x128xf32>
      %162 = vector.extract_strided_slice %161 {offsets = [0, 0], sizes = [2, 32], strides = [1, 1]} : vector<2x128xf32> to vector<2x32xf32>
      %163 = arith.negf %162 : vector<2x32xf32>
      %164 = math.exp %163 : vector<2x32xf32>
      %cst_43 = arith.constant 1.000000e+00 : f32
      %165 = vector.broadcast %cst_43 : f32 to vector<2x32xf32>
      %166 = arith.addf %165, %164 : vector<2x32xf32>
      %167 = arith.divf %165, %166 : vector<2x32xf32>
      %168 = vector.extract_strided_slice %161 {offsets = [0, 32], sizes = [2, 32], strides = [1, 1]} : vector<2x128xf32> to vector<2x32xf32>
      %169 = arith.negf %168 : vector<2x32xf32>
      %170 = math.exp %169 : vector<2x32xf32>
      %cst_44 = arith.constant 1.000000e+00 : f32
      %171 = vector.broadcast %cst_44 : f32 to vector<2x32xf32>
      %172 = arith.addf %171, %170 : vector<2x32xf32>
      %173 = arith.divf %171, %172 : vector<2x32xf32>
      %174 = vector.extract_strided_slice %161 {offsets = [0, 64], sizes = [2, 32], strides = [1, 1]} : vector<2x128xf32> to vector<2x32xf32>
      %175 = math.tanh %174 : vector<2x32xf32>
      %176 = vector.extract_strided_slice %161 {offsets = [0, 96], sizes = [2, 32], strides = [1, 1]} : vector<2x128xf32> to vector<2x32xf32>
      %177 = arith.negf %176 : vector<2x32xf32>
      %178 = math.exp %177 : vector<2x32xf32>
      %cst_45 = arith.constant 1.000000e+00 : f32
      %179 = vector.broadcast %cst_45 : f32 to vector<2x32xf32>
      %180 = arith.addf %179, %178 : vector<2x32xf32>
      %181 = arith.divf %179, %180 : vector<2x32xf32>
      %182 = arith.mulf %173, %148 : vector<2x32xf32>
      %183 = arith.mulf %167, %175 : vector<2x32xf32>
      %184 = arith.addf %182, %183 : vector<2x32xf32>
      %185 = math.tanh %184 : vector<2x32xf32>
      %186 = arith.mulf %181, %185 : vector<2x32xf32>
      %187 = vector.broadcast %156 : i32 to vector<2x1xi32>
      %188 = arith.cmpi slt, %187, %14 : vector<2x1xi32>
      %189 = vector.shape_cast %188 : vector<2x1xi1> to vector<2x1xi1>
      %190 = vector.broadcast %189 : vector<2x1xi1> to vector<2x32xi1>
      %191 = arith.select %190, %186, %145 : vector<2x32xi1>, vector<2x32xf32>
      %192 = vector.shape_cast %188 : vector<2x1xi1> to vector<2x1xi1>
      %193 = vector.broadcast %192 : vector<2x1xi1> to vector<2x32xi1>
      %194 = arith.select %193, %184, %148 : vector<2x32xi1>, vector<2x32xf32>
      %cst_46 = arith.constant 0.000000e+00 : f32
      %195 = vector.shape_cast %188 : vector<2x1xi1> to vector<2x1xi1>
      %196 = vector.broadcast %195 : vector<2x1xi1> to vector<2x32xi1>
      %197 = vector.broadcast %cst_46 : f32 to vector<2x32xf32>
      %198 = arith.select %196, %186, %197 : vector<2x32xi1>, vector<2x32xf32>
      %199 = vector.shape_cast %198 : vector<2x32xf32> to vector<2x1x32xf32>
      %c0_47 = arith.constant 0 : index
      %200 = arith.index_cast %c3_i32 : i32 to index
      %c0_48 = arith.constant 0 : index
      %201 = vector.load %arg5[%c0_47, %200, %c0_48] : memref<2x8x32xf32, #tpu.memory_space<vmem>>, vector<2x1x32xf32>
      tpu.vector_store %arg5[%c0_47, %200, %c0_48], %199 {strides = array<i32>} : memref<2x8x32xf32, #tpu.memory_space<vmem>>, vector<2x1x32xf32>,
      %c4_i32 = arith.constant 4 : i32
      %202 = arith.addi %0, %c4_i32 : i32
      %203 = arith.index_cast %c4_i32 : i32 to index
      %c0_49 = arith.constant 0 : index
      %c0_50 = arith.constant 0 : index
      %204 = vector.load %arg2[%203, %c0_49, %c0_50] : memref<8x2x128xf32, #tpu.memory_space<vmem>>, vector<1x2x128xf32>
      %205 = vector.shape_cast %204 : vector<1x2x128xf32> to vector<2x128xf32>
      %cst_51 = arith.constant dense<0.000000e+00> : vector<2x128xf32>
      %206 = tpu.matmul %191, %15, %cst_51 {dimension_numbers = #tpu.dot_dimension_numbers<[1], [0], [0], [1], [0, 0, 1, 1], [], []>} : vector<2x32xf32>, vector<32x128xf32>, vector<2x128xf32> -> vector<2x128xf32>
      %207 = arith.addf %205, %206 : vector<2x128xf32>
      %208 = vector.extract_strided_slice %207 {offsets = [0, 0], sizes = [2, 32], strides = [1, 1]} : vector<2x128xf32> to vector<2x32xf32>
      %209 = arith.negf %208 : vector<2x32xf32>
      %210 = math.exp %209 : vector<2x32xf32>
      %cst_52 = arith.constant 1.000000e+00 : f32
      %211 = vector.broadcast %cst_52 : f32 to vector<2x32xf32>
      %212 = arith.addf %211, %210 : vector<2x32xf32>
      %213 = arith.divf %211, %212 : vector<2x32xf32>
      %214 = vector.extract_strided_slice %207 {offsets = [0, 32], sizes = [2, 32], strides = [1, 1]} : vector<2x128xf32> to vector<2x32xf32>
      %215 = arith.negf %214 : vector<2x32xf32>
      %216 = math.exp %215 : vector<2x32xf32>
      %cst_53 = arith.constant 1.000000e+00 : f32
      %217 = vector.broadcast %cst_53 : f32 to vector<2x32xf32>
      %218 = arith.addf %217, %216 : vector<2x32xf32>
      %219 = arith.divf %217, %218 : vector<2x32xf32>
      %220 = vector.extract_strided_slice %207 {offsets = [0, 64], sizes = [2, 32], strides = [1, 1]} : vector<2x128xf32> to vector<2x32xf32>
      %221 = math.tanh %220 : vector<2x32xf32>
      %222 = vector.extract_strided_slice %207 {offsets = [0, 96], sizes = [2, 32], strides = [1, 1]} : vector<2x128xf32> to vector<2x32xf32>
      %223 = arith.negf %222 : vector<2x32xf32>
      %224 = math.exp %223 : vector<2x32xf32>
      %cst_54 = arith.constant 1.000000e+00 : f32
      %225 = vector.broadcast %cst_54 : f32 to vector<2x32xf32>
      %226 = arith.addf %225, %224 : vector<2x32xf32>
      %227 = arith.divf %225, %226 : vector<2x32xf32>
      %228 = arith.mulf %219, %194 : vector<2x32xf32>
      %229 = arith.mulf %213, %221 : vector<2x32xf32>
      %230 = arith.addf %228, %229 : vector<2x32xf32>
      %231 = math.tanh %230 : vector<2x32xf32>
      %232 = arith.mulf %227, %231 : vector<2x32xf32>
      %233 = vector.broadcast %202 : i32 to vector<2x1xi32>
      %234 = arith.cmpi slt, %233, %14 : vector<2x1xi32>
      %235 = vector.shape_cast %234 : vector<2x1xi1> to vector<2x1xi1>
      %236 = vector.broadcast %235 : vector<2x1xi1> to vector<2x32xi1>
      %237 = arith.select %236, %232, %191 : vector<2x32xi1>, vector<2x32xf32>
      %238 = vector.shape_cast %234 : vector<2x1xi1> to vector<2x1xi1>
      %239 = vector.broadcast %238 : vector<2x1xi1> to vector<2x32xi1>
      %240 = arith.select %239, %230, %194 : vector<2x32xi1>, vector<2x32xf32>
      %cst_55 = arith.constant 0.000000e+00 : f32
      %241 = vector.shape_cast %234 : vector<2x1xi1> to vector<2x1xi1>
      %242 = vector.broadcast %241 : vector<2x1xi1> to vector<2x32xi1>
      %243 = vector.broadcast %cst_55 : f32 to vector<2x32xf32>
      %244 = arith.select %242, %232, %243 : vector<2x32xi1>, vector<2x32xf32>
      %245 = vector.shape_cast %244 : vector<2x32xf32> to vector<2x1x32xf32>
      %c0_56 = arith.constant 0 : index
      %246 = arith.index_cast %c4_i32 : i32 to index
      %c0_57 = arith.constant 0 : index
      %247 = vector.load %arg5[%c0_56, %246, %c0_57] : memref<2x8x32xf32, #tpu.memory_space<vmem>>, vector<2x1x32xf32>
      tpu.vector_store %arg5[%c0_56, %246, %c0_57], %245 {strides = array<i32>} : memref<2x8x32xf32, #tpu.memory_space<vmem>>, vector<2x1x32xf32>,
      %c5_i32 = arith.constant 5 : i32
      %248 = arith.addi %0, %c5_i32 : i32
      %249 = arith.index_cast %c5_i32 : i32 to index
      %c0_58 = arith.constant 0 : index
      %c0_59 = arith.constant 0 : index
      %250 = vector.load %arg2[%249, %c0_58, %c0_59] : memref<8x2x128xf32, #tpu.memory_space<vmem>>, vector<1x2x128xf32>
      %251 = vector.shape_cast %250 : vector<1x2x128xf32> to vector<2x128xf32>
      %cst_60 = arith.constant dense<0.000000e+00> : vector<2x128xf32>
      %252 = tpu.matmul %237, %15, %cst_60 {dimension_numbers = #tpu.dot_dimension_numbers<[1], [0], [0], [1], [0, 0, 1, 1], [], []>} : vector<2x32xf32>, vector<32x128xf32>, vector<2x128xf32> -> vector<2x128xf32>
      %253 = arith.addf %251, %252 : vector<2x128xf32>
      %254 = vector.extract_strided_slice %253 {offsets = [0, 0], sizes = [2, 32], strides = [1, 1]} : vector<2x128xf32> to vector<2x32xf32>
      %255 = arith.negf %254 : vector<2x32xf32>
      %256 = math.exp %255 : vector<2x32xf32>
      %cst_61 = arith.constant 1.000000e+00 : f32
      %257 = vector.broadcast %cst_61 : f32 to vector<2x32xf32>
      %258 = arith.addf %257, %256 : vector<2x32xf32>
      %259 = arith.divf %257, %258 : vector<2x32xf32>
      %260 = vector.extract_strided_slice %253 {offsets = [0, 32], sizes = [2, 32], strides = [1, 1]} : vector<2x128xf32> to vector<2x32xf32>
      %261 = arith.negf %260 : vector<2x32xf32>
      %262 = math.exp %261 : vector<2x32xf32>
      %cst_62 = arith.constant 1.000000e+00 : f32
      %263 = vector.broadcast %cst_62 : f32 to vector<2x32xf32>
      %264 = arith.addf %263, %262 : vector<2x32xf32>
      %265 = arith.divf %263, %264 : vector<2x32xf32>
      %266 = vector.extract_strided_slice %253 {offsets = [0, 64], sizes = [2, 32], strides = [1, 1]} : vector<2x128xf32> to vector<2x32xf32>
      %267 = math.tanh %266 : vector<2x32xf32>
      %268 = vector.extract_strided_slice %253 {offsets = [0, 96], sizes = [2, 32], strides = [1, 1]} : vector<2x128xf32> to vector<2x32xf32>
      %269 = arith.negf %268 : vector<2x32xf32>
      %270 = math.exp %269 : vector<2x32xf32>
      %cst_63 = arith.constant 1.000000e+00 : f32
      %271 = vector.broadcast %cst_63 : f32 to vector<2x32xf32>
      %272 = arith.addf %271, %270 : vector<2x32xf32>
      %273 = arith.divf %271, %272 : vector<2x32xf32>
      %274 = arith.mulf %265, %240 : vector<2x32xf32>
      %275 = arith.mulf %259, %267 : vector<2x32xf32>
      %276 = arith.addf %274, %275 : vector<2x32xf32>
      %277 = math.tanh %276 : vector<2x32xf32>
      %278 = arith.mulf %273, %277 : vector<2x32xf32>
      %279 = vector.broadcast %248 : i32 to vector<2x1xi32>
      %280 = arith.cmpi slt, %279, %14 : vector<2x1xi32>
      %281 = vector.shape_cast %280 : vector<2x1xi1> to vector<2x1xi1>
      %282 = vector.broadcast %281 : vector<2x1xi1> to vector<2x32xi1>
      %283 = arith.select %282, %278, %237 : vector<2x32xi1>, vector<2x32xf32>
      %284 = vector.shape_cast %280 : vector<2x1xi1> to vector<2x1xi1>
      %285 = vector.broadcast %284 : vector<2x1xi1> to vector<2x32xi1>
      %286 = arith.select %285, %276, %240 : vector<2x32xi1>, vector<2x32xf32>
      %cst_64 = arith.constant 0.000000e+00 : f32
      %287 = vector.shape_cast %280 : vector<2x1xi1> to vector<2x1xi1>
      %288 = vector.broadcast %287 : vector<2x1xi1> to vector<2x32xi1>
      %289 = vector.broadcast %cst_64 : f32 to vector<2x32xf32>
      %290 = arith.select %288, %278, %289 : vector<2x32xi1>, vector<2x32xf32>
      %291 = vector.shape_cast %290 : vector<2x32xf32> to vector<2x1x32xf32>
      %c0_65 = arith.constant 0 : index
      %292 = arith.index_cast %c5_i32 : i32 to index
      %c0_66 = arith.constant 0 : index
      %293 = vector.load %arg5[%c0_65, %292, %c0_66] : memref<2x8x32xf32, #tpu.memory_space<vmem>>, vector<2x1x32xf32>
      tpu.vector_store %arg5[%c0_65, %292, %c0_66], %291 {strides = array<i32>} : memref<2x8x32xf32, #tpu.memory_space<vmem>>, vector<2x1x32xf32>,
      %c6_i32 = arith.constant 6 : i32
      %294 = arith.addi %0, %c6_i32 : i32
      %295 = arith.index_cast %c6_i32 : i32 to index
      %c0_67 = arith.constant 0 : index
      %c0_68 = arith.constant 0 : index
      %296 = vector.load %arg2[%295, %c0_67, %c0_68] : memref<8x2x128xf32, #tpu.memory_space<vmem>>, vector<1x2x128xf32>
      %297 = vector.shape_cast %296 : vector<1x2x128xf32> to vector<2x128xf32>
      %cst_69 = arith.constant dense<0.000000e+00> : vector<2x128xf32>
      %298 = tpu.matmul %283, %15, %cst_69 {dimension_numbers = #tpu.dot_dimension_numbers<[1], [0], [0], [1], [0, 0, 1, 1], [], []>} : vector<2x32xf32>, vector<32x128xf32>, vector<2x128xf32> -> vector<2x128xf32>
      %299 = arith.addf %297, %298 : vector<2x128xf32>
      %300 = vector.extract_strided_slice %299 {offsets = [0, 0], sizes = [2, 32], strides = [1, 1]} : vector<2x128xf32> to vector<2x32xf32>
      %301 = arith.negf %300 : vector<2x32xf32>
      %302 = math.exp %301 : vector<2x32xf32>
      %cst_70 = arith.constant 1.000000e+00 : f32
      %303 = vector.broadcast %cst_70 : f32 to vector<2x32xf32>
      %304 = arith.addf %303, %302 : vector<2x32xf32>
      %305 = arith.divf %303, %304 : vector<2x32xf32>
      %306 = vector.extract_strided_slice %299 {offsets = [0, 32], sizes = [2, 32], strides = [1, 1]} : vector<2x128xf32> to vector<2x32xf32>
      %307 = arith.negf %306 : vector<2x32xf32>
      %308 = math.exp %307 : vector<2x32xf32>
      %cst_71 = arith.constant 1.000000e+00 : f32
      %309 = vector.broadcast %cst_71 : f32 to vector<2x32xf32>
      %310 = arith.addf %309, %308 : vector<2x32xf32>
      %311 = arith.divf %309, %310 : vector<2x32xf32>
      %312 = vector.extract_strided_slice %299 {offsets = [0, 64], sizes = [2, 32], strides = [1, 1]} : vector<2x128xf32> to vector<2x32xf32>
      %313 = math.tanh %312 : vector<2x32xf32>
      %314 = vector.extract_strided_slice %299 {offsets = [0, 96], sizes = [2, 32], strides = [1, 1]} : vector<2x128xf32> to vector<2x32xf32>
      %315 = arith.negf %314 : vector<2x32xf32>
      %316 = math.exp %315 : vector<2x32xf32>
      %cst_72 = arith.constant 1.000000e+00 : f32
      %317 = vector.broadcast %cst_72 : f32 to vector<2x32xf32>
      %318 = arith.addf %317, %316 : vector<2x32xf32>
      %319 = arith.divf %317, %318 : vector<2x32xf32>
      %320 = arith.mulf %311, %286 : vector<2x32xf32>
      %321 = arith.mulf %305, %313 : vector<2x32xf32>
      %322 = arith.addf %320, %321 : vector<2x32xf32>
      %323 = math.tanh %322 : vector<2x32xf32>
      %324 = arith.mulf %319, %323 : vector<2x32xf32>
      %325 = vector.broadcast %294 : i32 to vector<2x1xi32>
      %326 = arith.cmpi slt, %325, %14 : vector<2x1xi32>
      %327 = vector.shape_cast %326 : vector<2x1xi1> to vector<2x1xi1>
      %328 = vector.broadcast %327 : vector<2x1xi1> to vector<2x32xi1>
      %329 = arith.select %328, %324, %283 : vector<2x32xi1>, vector<2x32xf32>
      %330 = vector.shape_cast %326 : vector<2x1xi1> to vector<2x1xi1>
      %331 = vector.broadcast %330 : vector<2x1xi1> to vector<2x32xi1>
      %332 = arith.select %331, %322, %286 : vector<2x32xi1>, vector<2x32xf32>
      %cst_73 = arith.constant 0.000000e+00 : f32
      %333 = vector.shape_cast %326 : vector<2x1xi1> to vector<2x1xi1>
      %334 = vector.broadcast %333 : vector<2x1xi1> to vector<2x32xi1>
      %335 = vector.broadcast %cst_73 : f32 to vector<2x32xf32>
      %336 = arith.select %334, %324, %335 : vector<2x32xi1>, vector<2x32xf32>
      %337 = vector.shape_cast %336 : vector<2x32xf32> to vector<2x1x32xf32>
      %c0_74 = arith.constant 0 : index
      %338 = arith.index_cast %c6_i32 : i32 to index
      %c0_75 = arith.constant 0 : index
      %339 = vector.load %arg5[%c0_74, %338, %c0_75] : memref<2x8x32xf32, #tpu.memory_space<vmem>>, vector<2x1x32xf32>
      tpu.vector_store %arg5[%c0_74, %338, %c0_75], %337 {strides = array<i32>} : memref<2x8x32xf32, #tpu.memory_space<vmem>>, vector<2x1x32xf32>,
      %c7_i32 = arith.constant 7 : i32
      %340 = arith.addi %0, %c7_i32 : i32
      %341 = arith.index_cast %c7_i32 : i32 to index
      %c0_76 = arith.constant 0 : index
      %c0_77 = arith.constant 0 : index
      %342 = vector.load %arg2[%341, %c0_76, %c0_77] : memref<8x2x128xf32, #tpu.memory_space<vmem>>, vector<1x2x128xf32>
      %343 = vector.shape_cast %342 : vector<1x2x128xf32> to vector<2x128xf32>
      %cst_78 = arith.constant dense<0.000000e+00> : vector<2x128xf32>
      %344 = tpu.matmul %329, %15, %cst_78 {dimension_numbers = #tpu.dot_dimension_numbers<[1], [0], [0], [1], [0, 0, 1, 1], [], []>} : vector<2x32xf32>, vector<32x128xf32>, vector<2x128xf32> -> vector<2x128xf32>
      %345 = arith.addf %343, %344 : vector<2x128xf32>
      %346 = vector.extract_strided_slice %345 {offsets = [0, 0], sizes = [2, 32], strides = [1, 1]} : vector<2x128xf32> to vector<2x32xf32>
      %347 = arith.negf %346 : vector<2x32xf32>
      %348 = math.exp %347 : vector<2x32xf32>
      %cst_79 = arith.constant 1.000000e+00 : f32
      %349 = vector.broadcast %cst_79 : f32 to vector<2x32xf32>
      %350 = arith.addf %349, %348 : vector<2x32xf32>
      %351 = arith.divf %349, %350 : vector<2x32xf32>
      %352 = vector.extract_strided_slice %345 {offsets = [0, 32], sizes = [2, 32], strides = [1, 1]} : vector<2x128xf32> to vector<2x32xf32>
      %353 = arith.negf %352 : vector<2x32xf32>
      %354 = math.exp %353 : vector<2x32xf32>
      %cst_80 = arith.constant 1.000000e+00 : f32
      %355 = vector.broadcast %cst_80 : f32 to vector<2x32xf32>
      %356 = arith.addf %355, %354 : vector<2x32xf32>
      %357 = arith.divf %355, %356 : vector<2x32xf32>
      %358 = vector.extract_strided_slice %345 {offsets = [0, 64], sizes = [2, 32], strides = [1, 1]} : vector<2x128xf32> to vector<2x32xf32>
      %359 = math.tanh %358 : vector<2x32xf32>
      %360 = vector.extract_strided_slice %345 {offsets = [0, 96], sizes = [2, 32], strides = [1, 1]} : vector<2x128xf32> to vector<2x32xf32>
      %361 = arith.negf %360 : vector<2x32xf32>
      %362 = math.exp %361 : vector<2x32xf32>
      %cst_81 = arith.constant 1.000000e+00 : f32
      %363 = vector.broadcast %cst_81 : f32 to vector<2x32xf32>
      %364 = arith.addf %363, %362 : vector<2x32xf32>
      %365 = arith.divf %363, %364 : vector<2x32xf32>
      %366 = arith.mulf %357, %332 : vector<2x32xf32>
      %367 = arith.mulf %351, %359 : vector<2x32xf32>
      %368 = arith.addf %366, %367 : vector<2x32xf32>
      %369 = math.tanh %368 : vector<2x32xf32>
      %370 = arith.mulf %365, %369 : vector<2x32xf32>
      %371 = vector.broadcast %340 : i32 to vector<2x1xi32>
      %372 = arith.cmpi slt, %371, %14 : vector<2x1xi32>
      %373 = vector.shape_cast %372 : vector<2x1xi1> to vector<2x1xi1>
      %374 = vector.broadcast %373 : vector<2x1xi1> to vector<2x32xi1>
      %375 = arith.select %374, %370, %329 : vector<2x32xi1>, vector<2x32xf32>
      %376 = vector.shape_cast %372 : vector<2x1xi1> to vector<2x1xi1>
      %377 = vector.broadcast %376 : vector<2x1xi1> to vector<2x32xi1>
      %378 = arith.select %377, %368, %332 : vector<2x32xi1>, vector<2x32xf32>
      %cst_82 = arith.constant 0.000000e+00 : f32
      %379 = vector.shape_cast %372 : vector<2x1xi1> to vector<2x1xi1>
      %380 = vector.broadcast %379 : vector<2x1xi1> to vector<2x32xi1>
      %381 = vector.broadcast %cst_82 : f32 to vector<2x32xf32>
      %382 = arith.select %380, %370, %381 : vector<2x32xi1>, vector<2x32xf32>
      %383 = vector.shape_cast %382 : vector<2x32xf32> to vector<2x1x32xf32>
      %c0_83 = arith.constant 0 : index
      %384 = arith.index_cast %c7_i32 : i32 to index
      %c0_84 = arith.constant 0 : index
      %385 = vector.load %arg5[%c0_83, %384, %c0_84] : memref<2x8x32xf32, #tpu.memory_space<vmem>>, vector<2x1x32xf32>
      tpu.vector_store %arg5[%c0_83, %384, %c0_84], %383 {strides = array<i32>} : memref<2x8x32xf32, #tpu.memory_space<vmem>>, vector<2x1x32xf32>,
      %c8_i32_85 = arith.constant 8 : i32
      %c0_86 = arith.constant 0 : index
      %c0_87 = arith.constant 0 : index
      %386 = vector.load %arg7[%c0_86, %c0_87] : memref<2x32xf32, #tpu.memory_space<vmem>>, vector<2x32xf32>
      tpu.vector_store %arg7[%c0_86, %c0_87], %375 {strides = array<i32>} : memref<2x32xf32, #tpu.memory_space<vmem>>, vector<2x32xf32>,
      %c0_88 = arith.constant 0 : index
      %c0_89 = arith.constant 0 : index
      %387 = vector.load %arg8[%c0_88, %c0_89] : memref<2x32xf32, #tpu.memory_space<vmem>>, vector<2x32xf32>
      tpu.vector_store %arg8[%c0_88, %c0_89], %378 {strides = array<i32>} : memref<2x32xf32, #tpu.memory_space<vmem>>, vector<2x32xf32>,
    } else {
    }
    %c0_i32_3 = arith.constant 0 : i32
    %11 = arith.cmpi eq, %arg0, %c0_i32_3 : i32
    %12 = arith.extui %11 : i1 to i32
    %c0_i32_4 = arith.constant 0 : i32
    %13 = arith.cmpi ne, %12, %c0_i32_4 : i32
    scf.if %13 {
      %c0_5 = arith.constant 0 : index
      %c0_6 = arith.constant 0 : index
      %14 = vector.load %arg7[%c0_5, %c0_6] : memref<2x32xf32, #tpu.memory_space<vmem>>, vector<2x32xf32>
      %c0_7 = arith.constant 0 : index
      %c0_8 = arith.constant 0 : index
      %15 = vector.load %arg6[%c0_7, %c0_8] : memref<2x32xf32, #tpu.memory_space<vmem>>, vector<2x32xf32>
      tpu.vector_store %arg6[%c0_7, %c0_8], %14 {strides = array<i32>} : memref<2x32xf32, #tpu.memory_space<vmem>>, vector<2x32xf32>,
    } else {
    }
    return
  }
  func.func @transform_0(%arg0: i32, %arg1: memref<1xi32, #tpu.memory_space<smem>>) -> (i32, i32, i32) {
    %c0_i32 = arith.constant 0 : i32
    %c0_i32_0 = arith.constant 0 : i32
    %c0_i32_1 = arith.constant 0 : i32
    return %arg0, %c0_i32, %c0_i32_0 : i32, i32, i32
  }
  func.func @transform_1(%arg0: i32, %arg1: memref<1xi32, #tpu.memory_space<smem>>) -> (i32, i32) {
    %c0_i32 = arith.constant 0 : i32
    %c0_i32_0 = arith.constant 0 : i32
    %c0_i32_1 = arith.constant 0 : i32
    return %c0_i32, %c0_i32_0 : i32, i32
  }
  func.func @transform_2(%arg0: i32, %arg1: memref<1xi32, #tpu.memory_space<smem>>) -> (i32, i32) {
    %c0_i32 = arith.constant 0 : i32
    %c0_i32_0 = arith.constant 0 : i32
    %c0_i32_1 = arith.constant 0 : i32
    return %c0_i32, %c0_i32_0 : i32, i32
  }
  func.func @transform_3(%arg0: i32, %arg1: memref<1xi32, #tpu.memory_space<smem>>) -> (i32, i32, i32) {
    %c0_i32 = arith.constant 0 : i32
    %c0_i32_0 = arith.constant 0 : i32
    %c0_i32_1 = arith.constant 0 : i32
    return %c0_i32, %arg0, %c0_i32_0 : i32, i32, i32
  }
  func.func @transform_4(%arg0: i32, %arg1: memref<1xi32, #tpu.memory_space<smem>>) -> (i32, i32) {
    %c0_i32 = arith.constant 0 : i32
    %c0_i32_0 = arith.constant 0 : i32
    %c0_i32_1 = arith.constant 0 : i32
    return %c0_i32, %c0_i32_0 : i32, i32
  }
}

</mosaic_0001>

<llo_original>
// kernel: rnn_encoder_forward.1
$region0: #{rnn_encoder_forward.1}
  #allocation0 [shape = 'u32[]', space=smem, size = 0x4, offset = 0x4, fixed_abs, tag = 'smem constant byte address 0x4 - core index']
  #allocation1 [shape = 'u32[144,128]{1,0:T(1,128)}', space=vmem, size = 0x12000, scoped, tag = 'internal scratch']
  #allocation2 [shape = 'f32[2,32]{1,0:T(2,128)}', space=vmem, size = 0x400, scoped, tag = 'scratch operand']
  #allocation3 [shape = 'f32[2,32]{1,0:T(2,128)}', space=vmem, size = 0x400, scoped, tag = 'scratch operand']
  #allocation4 [shape = 's32[1]{0}', space=sflag, size = 0x4, scoped, tag = 'scoped memory for rnn_encoder_forward.1']
  #allocation5 [shape = 's32[1]{0:T(128)S(6)}', space=smem, size = 0x200, scoped, tag = 'prefetched SMEM operand 0']
  %s0 = inlined_call_operand.<no memory space> [shape: s32[1], index: 0, kind: input, shape index: {}]
  %s1 = inlined_call_operand.vmem [shape: f32[8,2,128], index: 1, kind: input, shape index: {}]
  %s2 = inlined_call_operand.vmem [shape: f32[32,128], index: 2, kind: input, shape index: {}]
  %s3 = inlined_call_operand.vmem [shape: s32[2,1], index: 3, kind: input, shape index: {}]
  %s4 = inlined_call_operand.hbm [shape: f32[2,8,32], index: 4, kind: output, shape index: {0}]
  %s5 = inlined_call_operand.hbm [shape: f32[2,32], index: 5, kind: output, shape index: {1}]
  %6 = xla_tuple %s4, %s5
  %s7 = sld [smem:[#allocation0]]
  $region46: #{rnn_encoder_forward.1} parent=0
    _
  %s9 = ssub.s32 1, %s7
  %s10 = scalar_select 0, %s9, %s7
  %11 = sst [smem:[#allocation5]] %s0
  $region1: #{rnn_encoder_forward.1} parent=0
    #allocation6 [shape = 'u8[8192]{0}', space=vmem, size = 0x2000, scoped, tag = 'output window, operand 0, single buffered']
    #allocation7 [shape = 's32[1]{0}', space=sflag, size = 0x4, scoped, tag = 'scoped memory for rnn_encoder_forward.1']
    #allocation8 [shape = 'u8[1024]{0}', space=vmem, size = 0x400, scoped, tag = 'output window, operand 1, single buffered']
    #allocation9 [shape = 's32[1]{0}', space=sflag, size = 0x4, scoped, tag = 'scoped memory for rnn_encoder_forward.1']
    %12 = vsyncpa [#allocation7], 0
    %13 = vsyncpa [#allocation9], 0
    // Predicated region
    $region2: #{rnn_encoder_forward.1} parent=1 // pred_check
      _
    $region3: #{rnn_encoder_forward.1} parent=1 // pred_check_branch
      %15 = sbr.rel (0) target = $region5
    $region4: #{rnn_encoder_forward.1} parent=1 // pred_region
      _
    $region5: #{rnn_encoder_forward.1} parent=1 // pred_fallthru
      _
    // Predicated region
    $region6: #{rnn_encoder_forward.1} parent=1 // pred_check
      _
    $region7: #{rnn_encoder_forward.1} parent=1 // pred_check_branch
      %17 = sbr.rel (0) target = $region9
    $region8: #{rnn_encoder_forward.1} parent=1 // pred_region
      _
    $region9: #{rnn_encoder_forward.1} parent=1 // pred_fallthru
      _
    // Predicated region
    $region10: #{rnn_encoder_forward.1} parent=1 // pred_check
      _
    $region11: #{rnn_encoder_forward.1} parent=1 // pred_check_branch
      %19 = sbr.rel (0) target = $region13
    $region12: #{rnn_encoder_forward.1} parent=1 // pred_region
      _
    $region13: #{rnn_encoder_forward.1} parent=1 // pred_fallthru
      _
    %s20 = smul.u32 0, 8
    %s21 = sld [smem:[#allocation5]]
    %p22 = scmp.eq.s32.totalorder 0, 0
    // Predicated region
    $region14: #{rnn_encoder_forward.1} parent=1 // pred_check
      %p23 = pneg %p22
    $region15: #{rnn_encoder_forward.1} parent=1 // pred_check_branch
      %25 = sbr.rel (%p23) target = $region17
    $region16: #{rnn_encoder_forward.1} parent=1 // pred_region
      %vm26 = vcmask 254976
      %27 = vst.msk [vmem:[#allocation2] sm:$0x3] %vm26, 0.0
      %28 = vst.msk [vmem:[#allocation3] sm:$0x3] %vm26, 0.0
    $region17: #{rnn_encoder_forward.1} parent=1 // pred_fallthru
      _
    %p29 = scmp.ge.s32.totalorder %s20, %s21
    // Predicated region
    $region18: #{rnn_encoder_forward.1} parent=1 // pred_check
      %p30 = pneg %p29
    $region19: #{rnn_encoder_forward.1} parent=1 // pred_check_branch
      %32 = sbr.rel (%p30) target = $region21
    $region20: #{rnn_encoder_forward.1} parent=1 // pred_region
      %vm33 = vcmask 261120
      %34 = vst.msk [vmem:[#allocation6] sm:$0xff] %vm33, 0.0
      %35 = vst.msk [vmem:[#allocation6 + $0x8] sm:$0xff] %vm33, 0.0
    $region21: #{rnn_encoder_forward.1} parent=1 // pred_fallthru
      _
    %p36 = scmp.lt.s32.totalorder %s20, %s21
    // Predicated region
    $region22: #{rnn_encoder_forward.1} parent=1 // pred_check
      %p37 = pneg %p36
    $region23: #{rnn_encoder_forward.1} parent=1 // pred_check_branch
      %39 = sbr.rel (%p37) target = $region25
    $region24: #{rnn_encoder_forward.1} parent=1 // pred_region
      %v40 = vld [vmem:[%s3] sm:$0x3]
      %v41 = vld [vmem:[%s2] sm:$0xff]
      %v42 = vld [vmem:[%s2 + $0x8] sm:$0xff]
      %v43 = vld [vmem:[%s2 + $0x10] sm:$0xff]
      %v44 = vld [vmem:[%s2 + $0x18] sm:$0xff]
      %v45 = vld [vmem:[#allocation2] sm:$0x3]
      %v46 = vld [vmem:[#allocation3] sm:$0x3]
      %v47 = vld [vmem:[%s1] sm:$0x3]
      %vm48 = vcmask 261120
      %v50 = vsel %vm48, %v45, 0
      %52 = vmatprep.subr.mxu0 0.0
      %53 = vmatpush1.msra.mxu0 0.0
      %54 = vmatprep.subr.mxu0 0.0
      %55 = vmatpush1.msra.mxu0 0.0
      %56 = vmatprep.subr.mxu0 0.0
      %57 = vmatpush1.msra.mxu0 0.0
      %58 = vmatprep.subr.mxu0 0.0
      %59 = vmatpush1.msra.mxu0 0.0
      %60 = vmatprep.subr.mxu0 0.0
      %61 = vmatpush1.msra.mxu0 0.0
      %62 = vmatprep.subr.mxu0 0.0
      %63 = vmatpush1.msra.mxu0 0.0
      %64 = vmatprep.subr.mxu0 0.0
      %65 = vmatpush1.msra.mxu0 0.0
      %66 = vmatprep.subr.mxu0 0.0
      %67 = vmatpush1.msra.mxu0 0.0
      %68 = vmatprep.subr.mxu0 0.0
      %69 = vmatpush1.msra.mxu0 0.0
      %70 = vmatprep.subr.mxu0 0.0
      %71 = vmatpush1.msra.mxu0 0.0
      %72 = vmatprep.subr.mxu0 0.0
      %73 = vmatpush1.msra.mxu0 0.0
      %74 = vmatprep.subr.mxu0 0.0
      %75 = vmatpush1.msra.mxu0 0.0
      %76 = vmatprep.subr.mxu0 0.0
      %77 = vmatpush1.msra.mxu0 %v44
      %78 = vmatprep.subr.mxu0 0.0
      %79 = vmatpush1.msra.mxu0 %v43
      %80 = vmatprep.subr.mxu0 0.0
      %81 = vmatpush1.msra.mxu0 %v42
      %82 = vmatprep.subr.mxu0 0.0
      %83 = vmatpush1.msra.mxu0 %v41
      %84 = vmatprep.subr.mxu0 0.0
      %85 = vmatpush2.msra.mxu0 0.0
      %86 = vmatprep.subr.mxu0 0.0
      %87 = vmatpush2.msra.mxu0 0.0
      %88 = vmatprep.subr.mxu0 0.0
      %89 = vmatpush2.msra.mxu0 0.0
      %90 = vmatprep.subr.mxu0 0.0
      %91 = vmatpush2.msra.mxu0 0.0
      %92 = vmatprep.subr.mxu0 0.0
      %93 = vmatpush2.msra.mxu0 0.0
      %94 = vmatprep.subr.mxu0 0.0
      %95 = vmatpush2.msra.mxu0 0.0
      %96 = vmatprep.subr.mxu0 0.0
      %97 = vmatpush2.msra.mxu0 0.0
      %98 = vmatprep.subr.mxu0 0.0
      %99 = vmatpush2.msra.mxu0 0.0
      %100 = vmatprep.subr.mxu0 0.0
      %101 = vmatpush2.msra.mxu0 0.0
      %102 = vmatprep.subr.mxu0 0.0
      %103 = vmatpush2.msra.mxu0 0.0
      %104 = vmatprep.subr.mxu0 0.0
      %105 = vmatpush2.msra.mxu0 0.0
      %106 = vmatprep.subr.mxu0 0.0
      %107 = vmatpush2.msra.mxu0 0.0
      %108 = vmatprep.subr.mxu0 0.0
      %109 = vmatpush2.msra.mxu0 0.0
      %110 = vmatprep.subr.mxu0 0.0
      %111 = vmatpush2.msra.mxu0 0.0
      %112 = vmatprep.subr.mxu0 0.0
      %113 = vmatpush2.msra.mxu0 0.0
      %114 = vmatprep.subr.mxu0 0.0
      %115 = vmatpush2.msra.mxu0 0.0
      %116 = vmatprep.mubr.f32.mxu0 0.0
      %117 = vmatmul.mubr.f32.gmra.mxu0 %v50
      %v118 = vpop.f32.mrf.mxu0
      %v119 = vadd.f32 0.0, %v118
      %v120 = vpop.f32.mrf.mxu0
      %121 = vdwg.mxu0
      %v122 = vadd.f32 %v47, %v119
      %v123 = vxor.u32 %v122, 2147483648
      %v124 = vmul.f32 %v123, 1.442695
      %v125 = vpow.pop %v124
      %v126 = vadd.f32 %v125, 1.0
      %v127 = vrcp.pop %v126
      %v128 = vmul.f32 1.0, %v127
      %v129 = vtanh.pop %v122
      %131 = vrot.lane.b32.xlu0 %v46, 32
      %v132 = vpop.permute.xlu0 %131
      %v134 = vmul.f32 %v128, %v132
      %136 = vrot.lane.b32.xlu0 %v129, 64
      %v137 = vpop.permute.xlu0 %136
      %v139 = vmul.f32 %v128, %v137
      %141 = vrot.lane.b32.xlu0 %v139, 32
      %v142 = vpop.permute.xlu0 %141
      %v144 = vadd.f32 %v134, %v142
      %v145 = vtanh.pop %v144
      %147 = vrot.lane.b32.xlu0 %v145, 64
      %v148 = vpop.permute.xlu0 %147
      %v150 = vmul.f32 %v128, %v148
      %v151 = vstv %s20
      %vm152 = vcmp.lt.s32.totalorder %v151, %v40
      %v153 = vsel %vm152, 1, 0
      %154 = vset.pattern.permute.xlu0 0
      %155 = vperm.xlu0 %154, %v153
      %v156 = vpop.permute.xlu0 %155
      %vm157 = vcmp.eq.s32.totalorder %v156, 1
      %158 = vrot.lane.b32.xlu0 %v45, 96
      %v159 = vpop.permute.xlu0 %158
      %v161 = vsel %vm157, %v150, %v159
      %v162 = vsel %vm157, %v144, %v132
      %v163 = vsel %vm157, %v150, 0.0
      %v166 = vunpack.c.l.s4 1966171168
      %v167 = vunpack.c.0.s8 %v166
      %v168 = vlaneseq
      %v169 = vshrl.u32 %v168, 7
      %v170 = vsub.s32 %v167, %v169
      %v171 = vrot.slane %v163, %v170
      %v172 = vcombine.high %v171, %v171
      %v174 = vunpack.c.l.s4 1966171168
      %v175 = vunpack.c.0.s8 %v174
      %v176 = vlaneseq
      %v177 = vshrl.u32 %v176, 7
      %v178 = vsub.s32 %v175, %v177
      %v179 = vrot.slane %v171, %v178
      %v181 = vunpack.c.l.s4 1966171168
      %v182 = vunpack.c.0.s8 %v181
      %v183 = vlaneseq
      %v184 = vshrl.u32 %v183, 7
      %v185 = vsub.s32 %v182, %v184
      %v186 = vrot.slane %v172, %v185
      %v187 = vlaneseq
      %v188 = vshrl.u32 %v187, 7
      %v189 = vsub.s32 0, %v188
      %v190 = vrot.slane %v179, %v189
      %v191 = vlaneseq
      %v192 = vshrl.u32 %v191, 7
      %v193 = vsub.s32 0, %v192
      %v194 = vrot.slane %v186, %v193
      %195 = vrot.lane.b32.xlu0 %v190, 32
      %v196 = vpop.permute.xlu0 %195
      %197 = vrot.lane.b32.xlu0 %v194, 32
      %v198 = vpop.permute.xlu0 %197
      %vm201 = vcmask 253952
      %202 = vst.msk [vmem:[#allocation6] sm:$0x1] %vm201, %v196
      %203 = vst.msk [vmem:[#allocation6 + $0x8] sm:$0x1] %vm201, %v198
      %s204 = sadd.s32 %s20, 1
      %s205 = scalar_lea.vmem %s1, 2
      %v206 = vld [vmem:[%s205] sm:$0x3]
      %208 = vrot.lane.b32.xlu0 %v161, 32
      %v209 = vpop.permute.xlu0 %208
      %v210 = vsel %vm48, %v209, 0
      %212 = vmatprep.subr.mxu0 0.0
      %213 = vmatpush1.msra.mxu0 0.0
      %214 = vmatprep.subr.mxu0 0.0
      %215 = vmatpush1.msra.mxu0 0.0
      %216 = vmatprep.subr.mxu0 0.0
      %217 = vmatpush1.msra.mxu0 0.0
      %218 = vmatprep.subr.mxu0 0.0
      %219 = vmatpush1.msra.mxu0 0.0
      %220 = vmatprep.subr.mxu0 0.0
      %221 = vmatpush1.msra.mxu0 0.0
      %222 = vmatprep.subr.mxu0 0.0
      %223 = vmatpush1.msra.mxu0 0.0
      %224 = vmatprep.subr.mxu0 0.0
      %225 = vmatpush1.msra.mxu0 0.0
      %226 = vmatprep.subr.mxu0 0.0
      %227 = vmatpush1.msra.mxu0 0.0
      %228 = vmatprep.subr.mxu0 0.0
      %229 = vmatpush1.msra.mxu0 0.0
      %230 = vmatprep.subr.mxu0 0.0
      %231 = vmatpush1.msra.mxu0 0.0
      %232 = vmatprep.subr.mxu0 0.0
      %233 = vmatpush1.msra.mxu0 0.0
      %234 = vmatprep.subr.mxu0 0.0
      %235 = vmatpush1.msra.mxu0 0.0
      %236 = vmatprep.subr.mxu0 0.0
      %237 = vmatpush1.msra.mxu0 %v44
      %238 = vmatprep.subr.mxu0 0.0
      %239 = vmatpush1.msra.mxu0 %v43
      %240 = vmatprep.subr.mxu0 0.0
      %241 = vmatpush1.msra.mxu0 %v42
      %242 = vmatprep.subr.mxu0 0.0
      %243 = vmatpush1.msra.mxu0 %v41
      %244 = vmatprep.subr.mxu0 0.0
      %245 = vmatpush2.msra.mxu0 0.0
      %246 = vmatprep.subr.mxu0 0.0
      %247 = vmatpush2.msra.mxu0 0.0
      %248 = vmatprep.subr.mxu0 0.0
      %249 = vmatpush2.msra.mxu0 0.0
      %250 = vmatprep.subr.mxu0 0.0
      %251 = vmatpush2.msra.mxu0 0.0
      %252 = vmatprep.subr.mxu0 0.0
      %253 = vmatpush2.msra.mxu0 0.0
      %254 = vmatprep.subr.mxu0 0.0
      %255 = vmatpush2.msra.mxu0 0.0
      %256 = vmatprep.subr.mxu0 0.0
      %257 = vmatpush2.msra.mxu0 0.0
      %258 = vmatprep.subr.mxu0 0.0
      %259 = vmatpush2.msra.mxu0 0.0
      %260 = vmatprep.subr.mxu0 0.0
      %261 = vmatpush2.msra.mxu0 0.0
      %262 = vmatprep.subr.mxu0 0.0
      %263 = vmatpush2.msra.mxu0 0.0
      %264 = vmatprep.subr.mxu0 0.0
      %265 = vmatpush2.msra.mxu0 0.0
      %266 = vmatprep.subr.mxu0 0.0
      %267 = vmatpush2.msra.mxu0 0.0
      %268 = vmatprep.subr.mxu0 0.0
      %269 = vmatpush2.msra.mxu0 0.0
      %270 = vmatprep.subr.mxu0 0.0
      %271 = vmatpush2.msra.mxu0 0.0
      %272 = vmatprep.subr.mxu0 0.0
      %273 = vmatpush2.msra.mxu0 0.0
      %274 = vmatprep.subr.mxu0 0.0
      %275 = vmatpush2.msra.mxu0 0.0
      %276 = vmatprep.mubr.f32.mxu0 0.0
      %277 = vmatmul.mubr.f32.gmra.mxu0 %v210
      %v278 = vpop.f32.mrf.mxu0
      %v279 = vadd.f32 0.0, %v278
      %v280 = vpop.f32.mrf.mxu0
      %281 = vdwg.mxu0
      %v282 = vadd.f32 %v206, %v279
      %v283 = vxor.u32 %v282, 2147483648
      %v284 = vmul.f32 %v283, 1.442695
      %v285 = vpow.pop %v284
      %v286 = vadd.f32 %v285, 1.0
      %v287 = vrcp.pop %v286
      %v288 = vmul.f32 1.0, %v287
      %v289 = vtanh.pop %v282
      %v290 = vmul.f32 %v288, %v162
      %292 = vrot.lane.b32.xlu0 %v289, 64
      %v293 = vpop.permute.xlu0 %292
      %v295 = vmul.f32 %v288, %v293
      %297 = vrot.lane.b32.xlu0 %v295, 32
      %v298 = vpop.permute.xlu0 %297
      %v300 = vadd.f32 %v290, %v298
      %v301 = vtanh.pop %v300
      %303 = vrot.lane.b32.xlu0 %v301, 64
      %v304 = vpop.permute.xlu0 %303
      %v306 = vmul.f32 %v288, %v304
      %v307 = vstv %s204
      %vm308 = vcmp.lt.s32.totalorder %v307, %v40
      %v309 = vsel %vm308, 1, 0
      %310 = vset.pattern.permute.xlu0 0
      %311 = vperm.xlu0 %310, %v309
      %v312 = vpop.permute.xlu0 %311
      %vm313 = vcmp.eq.s32.totalorder %v312, 1
      %v314 = vsel %vm313, %v306, %v161
      %v315 = vsel %vm313, %v300, %v162
      %v316 = vsel %vm313, %v306, 0.0
      %v319 = vunpack.c.l.s4 1966171168
      %v320 = vunpack.c.0.s8 %v319
      %v321 = vlaneseq
      %v322 = vshrl.u32 %v321, 7
      %v323 = vsub.s32 %v320, %v322
      %v324 = vrot.slane %v316, %v323
      %v325 = vcombine.high %v324, %v324
      %v327 = vunpack.c.l.s4 1966171168
      %v328 = vunpack.c.0.s8 %v327
      %v329 = vlaneseq
      %v330 = vshrl.u32 %v329, 7
      %v331 = vsub.s32 %v328, %v330
      %v332 = vrot.slane %v324, %v331
      %v334 = vunpack.c.l.s4 1966171168
      %v335 = vunpack.c.0.s8 %v334
      %v336 = vlaneseq
      %v337 = vshrl.u32 %v336, 7
      %v338 = vsub.s32 %v335, %v337
      %v339 = vrot.slane %v325, %v338
      %v340 = vlaneseq
      %v341 = vshrl.u32 %v340, 7
      %v342 = vsub.s32 0, %v341
      %v343 = vrot.slane %v332, %v342
      %v344 = vlaneseq
      %v345 = vshrl.u32 %v344, 7
      %v346 = vsub.s32 0, %v345
      %v347 = vrot.slane %v339, %v346
      %348 = vrot.lane.b32.xlu0 %v343, 32
      %v349 = vpop.permute.xlu0 %348
      %350 = vrot.lane.b32.xlu0 %v347, 32
      %v351 = vpop.permute.xlu0 %350
      %354 = vst.msk [vmem:[#allocation6 + $0x1] sm:$0x1] %vm201, %v349
      %355 = vst.msk [vmem:[#allocation6 + $0x9] sm:$0x1] %vm201, %v351
      %s356 = sadd.s32 %s20, 2
      %s357 = scalar_lea.vmem %s1, 4
      %v358 = vld [vmem:[%s357] sm:$0x3]
      %360 = vrot.lane.b32.xlu0 %v314, 32
      %v361 = vpop.permute.xlu0 %360
      %v362 = vsel %vm48, %v361, 0
      %364 = vmatprep.subr.mxu0 0.0
      %365 = vmatpush1.msra.mxu0 0.0
      %366 = vmatprep.subr.mxu0 0.0
      %367 = vmatpush1.msra.mxu0 0.0
      %368 = vmatprep.subr.mxu0 0.0
      %369 = vmatpush1.msra.mxu0 0.0
      %370 = vmatprep.subr.mxu0 0.0
      %371 = vmatpush1.msra.mxu0 0.0
      %372 = vmatprep.subr.mxu0 0.0
      %373 = vmatpush1.msra.mxu0 0.0
      %374 = vmatprep.subr.mxu0 0.0
      %375 = vmatpush1.msra.mxu0 0.0
      %376 = vmatprep.subr.mxu0 0.0
      %377 = vmatpush1.msra.mxu0 0.0
      %378 = vmatprep.subr.mxu0 0.0
      %379 = vmatpush1.msra.mxu0 0.0
      %380 = vmatprep.subr.mxu0 0.0
      %381 = vmatpush1.msra.mxu0 0.0
      %382 = vmatprep.subr.mxu0 0.0
      %383 = vmatpush1.msra.mxu0 0.0
      %384 = vmatprep.subr.mxu0 0.0
      %385 = vmatpush1.msra.mxu0 0.0
      %386 = vmatprep.subr.mxu0 0.0
      %387 = vmatpush1.msra.mxu0 0.0
      %388 = vmatprep.subr.mxu0 0.0
      %389 = vmatpush1.msra.mxu0 %v44
      %390 = vmatprep.subr.mxu0 0.0
      %391 = vmatpush1.msra.mxu0 %v43
      %392 = vmatprep.subr.mxu0 0.0
      %393 = vmatpush1.msra.mxu0 %v42
      %394 = vmatprep.subr.mxu0 0.0
      %395 = vmatpush1.msra.mxu0 %v41
      %396 = vmatprep.subr.mxu0 0.0
      %397 = vmatpush2.msra.mxu0 0.0
      %398 = vmatprep.subr.mxu0 0.0
      %399 = vmatpush2.msra.mxu0 0.0
      %400 = vmatprep.subr.mxu0 0.0
      %401 = vmatpush2.msra.mxu0 0.0
      %402 = vmatprep.subr.mxu0 0.0
      %403 = vmatpush2.msra.mxu0 0.0
      %404 = vmatprep.subr.mxu0 0.0
      %405 = vmatpush2.msra.mxu0 0.0
      %406 = vmatprep.subr.mxu0 0.0
      %407 = vmatpush2.msra.mxu0 0.0
      %408 = vmatprep.subr.mxu0 0.0
      %409 = vmatpush2.msra.mxu0 0.0
      %410 = vmatprep.subr.mxu0 0.0
      %411 = vmatpush2.msra.mxu0 0.0
      %412 = vmatprep.subr.mxu0 0.0
      %413 = vmatpush2.msra.mxu0 0.0
      %414 = vmatprep.subr.mxu0 0.0
      %415 = vmatpush2.msra.mxu0 0.0
      %416 = vmatprep.subr.mxu0 0.0
      %417 = vmatpush2.msra.mxu0 0.0
      %418 = vmatprep.subr.mxu0 0.0
      %419 = vmatpush2.msra.mxu0 0.0
      %420 = vmatprep.subr.mxu0 0.0
      %421 = vmatpush2.msra.mxu0 0.0
      %422 = vmatprep.subr.mxu0 0.0
      %423 = vmatpush2.msra.mxu0 0.0
      %424 = vmatprep.subr.mxu0 0.0
      %425 = vmatpush2.msra.mxu0 0.0
      %426 = vmatprep.subr.mxu0 0.0
      %427 = vmatpush2.msra.mxu0 0.0
      %428 = vmatprep.mubr.f32.mxu0 0.0
      %429 = vmatmul.mubr.f32.gmra.mxu0 %v362
      %v430 = vpop.f32.mrf.mxu0
      %v431 = vadd.f32 0.0, %v430
      %v432 = vpop.f32.mrf.mxu0
      %433 = vdwg.mxu0
      %v434 = vadd.f32 %v358, %v431
      %v435 = vxor.u32 %v434, 2147483648
      %v436 = vmul.f32 %v435, 1.442695
      %v437 = vpow.pop %v436
      %v438 = vadd.f32 %v437, 1.0
      %v439 = vrcp.pop %v438
      %v440 = vmul.f32 1.0, %v439
      %v441 = vtanh.pop %v434
      %v442 = vmul.f32 %v440, %v315
      %444 = vrot.lane.b32.xlu0 %v441, 64
      %v445 = vpop.permute.xlu0 %444
      %v447 = vmul.f32 %v440, %v445
      %449 = vrot.lane.b32.xlu0 %v447, 32
      %v450 = vpop.permute.xlu0 %449
      %v452 = vadd.f32 %v442, %v450
      %v453 = vtanh.pop %v452
      %455 = vrot.lane.b32.xlu0 %v453, 64
      %v456 = vpop.permute.xlu0 %455
      %v458 = vmul.f32 %v440, %v456
      %v459 = vstv %s356
      %vm460 = vcmp.lt.s32.totalorder %v459, %v40
      %v461 = vsel %vm460, 1, 0
      %462 = vset.pattern.permute.xlu0 0
      %463 = vperm.xlu0 %462, %v461
      %v464 = vpop.permute.xlu0 %463
      %vm465 = vcmp.eq.s32.totalorder %v464, 1
      %v466 = vsel %vm465, %v458, %v314
      %v467 = vsel %vm465, %v452, %v315
      %v468 = vsel %vm465, %v458, 0.0
      %v471 = vunpack.c.l.s4 1966171168
      %v472 = vunpack.c.0.s8 %v471
      %v473 = vlaneseq
      %v474 = vshrl.u32 %v473, 7
      %v475 = vsub.s32 %v472, %v474
      %v476 = vrot.slane %v468, %v475
      %v477 = vcombine.high %v476, %v476
      %v479 = vunpack.c.l.s4 1966171168
      %v480 = vunpack.c.0.s8 %v479
      %v481 = vlaneseq
      %v482 = vshrl.u32 %v481, 7
      %v483 = vsub.s32 %v480, %v482
      %v484 = vrot.slane %v476, %v483
      %v486 = vunpack.c.l.s4 1966171168
      %v487 = vunpack.c.0.s8 %v486
      %v488 = vlaneseq
      %v489 = vshrl.u32 %v488, 7
      %v490 = vsub.s32 %v487, %v489
      %v491 = vrot.slane %v477, %v490
      %v492 = vlaneseq
      %v493 = vshrl.u32 %v492, 7
      %v494 = vsub.s32 0, %v493
      %v495 = vrot.slane %v484, %v494
      %v496 = vlaneseq
      %v497 = vshrl.u32 %v496, 7
      %v498 = vsub.s32 0, %v497
      %v499 = vrot.slane %v491, %v498
      %500 = vrot.lane.b32.xlu0 %v495, 32
      %v501 = vpop.permute.xlu0 %500
      %502 = vrot.lane.b32.xlu0 %v499, 32
      %v503 = vpop.permute.xlu0 %502
      %506 = vst.msk [vmem:[#allocation6 + $0x2] sm:$0x1] %vm201, %v501
      %507 = vst.msk [vmem:[#allocation6 + $0xa] sm:$0x1] %vm201, %v503
      %s508 = sadd.s32 %s20, 3
      %s509 = scalar_lea.vmem %s1, 6
      %v510 = vld [vmem:[%s509] sm:$0x3]
      %512 = vrot.lane.b32.xlu0 %v466, 32
      %v513 = vpop.permute.xlu0 %512
      %v514 = vsel %vm48, %v513, 0
      %516 = vmatprep.subr.mxu0 0.0
      %517 = vmatpush1.msra.mxu0 0.0
      %518 = vmatprep.subr.mxu0 0.0
      %519 = vmatpush1.msra.mxu0 0.0
      %520 = vmatprep.subr.mxu0 0.0
      %521 = vmatpush1.msra.mxu0 0.0
      %522 = vmatprep.subr.mxu0 0.0
      %523 = vmatpush1.msra.mxu0 0.0
      %524 = vmatprep.subr.mxu0 0.0
      %525 = vmatpush1.msra.mxu0 0.0
      %526 = vmatprep.subr.mxu0 0.0
      %527 = vmatpush1.msra.mxu0 0.0
      %528 = vmatprep.subr.mxu0 0.0
      %529 = vmatpush1.msra.mxu0 0.0
      %530 = vmatprep.subr.mxu0 0.0
      %531 = vmatpush1.msra.mxu0 0.0
      %532 = vmatprep.subr.mxu0 0.0
      %533 = vmatpush1.msra.mxu0 0.0
      %534 = vmatprep.subr.mxu0 0.0
      %535 = vmatpush1.msra.mxu0 0.0
      %536 = vmatprep.subr.mxu0 0.0
      %537 = vmatpush1.msra.mxu0 0.0
      %538 = vmatprep.subr.mxu0 0.0
      %539 = vmatpush1.msra.mxu0 0.0
      %540 = vmatprep.subr.mxu0 0.0
      %541 = vmatpush1.msra.mxu0 %v44
      %542 = vmatprep.subr.mxu0 0.0
      %543 = vmatpush1.msra.mxu0 %v43
      %544 = vmatprep.subr.mxu0 0.0
      %545 = vmatpush1.msra.mxu0 %v42
      %546 = vmatprep.subr.mxu0 0.0
      %547 = vmatpush1.msra.mxu0 %v41
      %548 = vmatprep.subr.mxu0 0.0
      %549 = vmatpush2.msra.mxu0 0.0
      %550 = vmatprep.subr.mxu0 0.0
      %551 = vmatpush2.msra.mxu0 0.0
      %552 = vmatprep.subr.mxu0 0.0
      %553 = vmatpush2.msra.mxu0 0.0
      %554 = vmatprep.subr.mxu0 0.0
      %555 = vmatpush2.msra.mxu0 0.0
      %556 = vmatprep.subr.mxu0 0.0
      %557 = vmatpush2.msra.mxu0 0.0
      %558 = vmatprep.subr.mxu0 0.0
      %559 = vmatpush2.msra.mxu0 0.0
      %560 = vmatprep.subr.mxu0 0.0
      %561 = vmatpush2.msra.mxu0 0.0
      %562 = vmatprep.subr.mxu0 0.0
      %563 = vmatpush2.msra.mxu0 0.0
      %564 = vmatprep.subr.mxu0 0.0
      %565 = vmatpush2.msra.mxu0 0.0
      %566 = vmatprep.subr.mxu0 0.0
      %567 = vmatpush2.msra.mxu0 0.0
      %568 = vmatprep.subr.mxu0 0.0
      %569 = vmatpush2.msra.mxu0 0.0
      %570 = vmatprep.subr.mxu0 0.0
      %571 = vmatpush2.msra.mxu0 0.0
      %572 = vmatprep.subr.mxu0 0.0
      %573 = vmatpush2.msra.mxu0 0.0
      %574 = vmatprep.subr.mxu0 0.0
      %575 = vmatpush2.msra.mxu0 0.0
      %576 = vmatprep.subr.mxu0 0.0
      %577 = vmatpush2.msra.mxu0 0.0
      %578 = vmatprep.subr.mxu0 0.0
      %579 = vmatpush2.msra.mxu0 0.0
      %580 = vmatprep.mubr.f32.mxu0 0.0
      %581 = vmatmul.mubr.f32.gmra.mxu0 %v514
      %v582 = vpop.f32.mrf.mxu0
      %v583 = vadd.f32 0.0, %v582
      %v584 = vpop.f32.mrf.mxu0
      %585 = vdwg.mxu0
      %v586 = vadd.f32 %v510, %v583
      %v587 = vxor.u32 %v586, 2147483648
      %v588 = vmul.f32 %v587, 1.442695
      %v589 = vpow.pop %v588
      %v590 = vadd.f32 %v589, 1.0
      %v591 = vrcp.pop %v590
      %v592 = vmul.f32 1.0, %v591
      %v593 = vtanh.pop %v586
      %v594 = vmul.f32 %v592, %v467
      %596 = vrot.lane.b32.xlu0 %v593, 64
      %v597 = vpop.permute.xlu0 %596
      %v599 = vmul.f32 %v592, %v597
      %601 = vrot.lane.b32.xlu0 %v599, 32
      %v602 = vpop.permute.xlu0 %601
      %v604 = vadd.f32 %v594, %v602
      %v605 = vtanh.pop %v604
      %607 = vrot.lane.b32.xlu0 %v605, 64
      %v608 = vpop.permute.xlu0 %607
      %v610 = vmul.f32 %v592, %v608
      %v611 = vstv %s508
      %vm612 = vcmp.lt.s32.totalorder %v611, %v40
      %v613 = vsel %vm612, 1, 0
      %614 = vset.pattern.permute.xlu0 0
      %615 = vperm.xlu0 %614, %v613
      %v616 = vpop.permute.xlu0 %615
      %vm617 = vcmp.eq.s32.totalorder %v616, 1
      %v618 = vsel %vm617, %v610, %v466
      %v619 = vsel %vm617, %v604, %v467
      %v620 = vsel %vm617, %v610, 0.0
      %v623 = vunpack.c.l.s4 1966171168
      %v624 = vunpack.c.0.s8 %v623
      %v625 = vlaneseq
      %v626 = vshrl.u32 %v625, 7
      %v627 = vsub.s32 %v624, %v626
      %v628 = vrot.slane %v620, %v627
      %v629 = vcombine.high %v628, %v628
      %v631 = vunpack.c.l.s4 1966171168
      %v632 = vunpack.c.0.s8 %v631
      %v633 = vlaneseq
      %v634 = vshrl.u32 %v633, 7
      %v635 = vsub.s32 %v632, %v634
      %v636 = vrot.slane %v628, %v635
      %v638 = vunpack.c.l.s4 1966171168
      %v639 = vunpack.c.0.s8 %v638
      %v640 = vlaneseq
      %v641 = vshrl.u32 %v640, 7
      %v642 = vsub.s32 %v639, %v641
      %v643 = vrot.slane %v629, %v642
      %v644 = vlaneseq
      %v645 = vshrl.u32 %v644, 7
      %v646 = vsub.s32 0, %v645
      %v647 = vrot.slane %v636, %v646
      %v648 = vlaneseq
      %v649 = vshrl.u32 %v648, 7
      %v650 = vsub.s32 0, %v649
      %v651 = vrot.slane %v643, %v650
      %652 = vrot.lane.b32.xlu0 %v647, 32
      %v653 = vpop.permute.xlu0 %652
      %654 = vrot.lane.b32.xlu0 %v651, 32
      %v655 = vpop.permute.xlu0 %654
      %658 = vst.msk [vmem:[#allocation6 + $0x3] sm:$0x1] %vm201, %v653
      %659 = vst.msk [vmem:[#allocation6 + $0xb] sm:$0x1] %vm201, %v655
      %s660 = sadd.s32 %s20, 4
      %s661 = scalar_lea.vmem %s1, 8
      %v662 = vld [vmem:[%s661] sm:$0x3]
      %664 = vrot.lane.b32.xlu0 %v618, 32
      %v665 = vpop.permute.xlu0 %664
      %v666 = vsel %vm48, %v665, 0
      %668 = vmatprep.subr.mxu0 0.0
      %669 = vmatpush1.msra.mxu0 0.0
      %670 = vmatprep.subr.mxu0 0.0
      %671 = vmatpush1.msra.mxu0 0.0
      %672 = vmatprep.subr.mxu0 0.0
      %673 = vmatpush1.msra.mxu0 0.0
      %674 = vmatprep.subr.mxu0 0.0
      %675 = vmatpush1.msra.mxu0 0.0
      %676 = vmatprep.subr.mxu0 0.0
      %677 = vmatpush1.msra.mxu0 0.0
      %678 = vmatprep.subr.mxu0 0.0
      %679 = vmatpush1.msra.mxu0 0.0
      %680 = vmatprep.subr.mxu0 0.0
      %681 = vmatpush1.msra.mxu0 0.0
      %682 = vmatprep.subr.mxu0 0.0
      %683 = vmatpush1.msra.mxu0 0.0
      %684 = vmatprep.subr.mxu0 0.0
      %685 = vmatpush1.msra.mxu0 0.0
      %686 = vmatprep.subr.mxu0 0.0
      %687 = vmatpush1.msra.mxu0 0.0
      %688 = vmatprep.subr.mxu0 0.0
      %689 = vmatpush1.msra.mxu0 0.0
      %690 = vmatprep.subr.mxu0 0.0
      %691 = vmatpush1.msra.mxu0 0.0
      %692 = vmatprep.subr.mxu0 0.0
      %693 = vmatpush1.msra.mxu0 %v44
      %694 = vmatprep.subr.mxu0 0.0
      %695 = vmatpush1.msra.mxu0 %v43
      %696 = vmatprep.subr.mxu0 0.0
      %697 = vmatpush1.msra.mxu0 %v42
      %698 = vmatprep.subr.mxu0 0.0
      %699 = vmatpush1.msra.mxu0 %v41
      %700 = vmatprep.subr.mxu0 0.0
      %701 = vmatpush2.msra.mxu0 0.0
      %702 = vmatprep.subr.mxu0 0.0
      %703 = vmatpush2.msra.mxu0 0.0
      %704 = vmatprep.subr.mxu0 0.0
      %705 = vmatpush2.msra.mxu0 0.0
      %706 = vmatprep.subr.mxu0 0.0
      %707 = vmatpush2.msra.mxu0 0.0
      %708 = vmatprep.subr.mxu0 0.0
      %709 = vmatpush2.msra.mxu0 0.0
      %710 = vmatprep.subr.mxu0 0.0
      %711 = vmatpush2.msra.mxu0 0.0
      %712 = vmatprep.subr.mxu0 0.0
      %713 = vmatpush2.msra.mxu0 0.0
      %714 = vmatprep.subr.mxu0 0.0
      %715 = vmatpush2.msra.mxu0 0.0
      %716 = vmatprep.subr.mxu0 0.0
      %717 = vmatpush2.msra.mxu0 0.0
      %718 = vmatprep.subr.mxu0 0.0
      %719 = vmatpush2.msra.mxu0 0.0
      %720 = vmatprep.subr.mxu0 0.0
      %721 = vmatpush2.msra.mxu0 0.0
      %722 = vmatprep.subr.mxu0 0.0
      %723 = vmatpush2.msra.mxu0 0.0
      %724 = vmatprep.subr.mxu0 0.0
      %725 = vmatpush2.msra.mxu0 0.0
      %726 = vmatprep.subr.mxu0 0.0
      %727 = vmatpush2.msra.mxu0 0.0
      %728 = vmatprep.subr.mxu0 0.0
      %729 = vmatpush2.msra.mxu0 0.0
      %730 = vmatprep.subr.mxu0 0.0
      %731 = vmatpush2.msra.mxu0 0.0
      %732 = vmatprep.mubr.f32.mxu0 0.0
      %733 = vmatmul.mubr.f32.gmra.mxu0 %v666
      %v734 = vpop.f32.mrf.mxu0
      %v735 = vadd.f32 0.0, %v734
      %v736 = vpop.f32.mrf.mxu0
      %737 = vdwg.mxu0
      %v738 = vadd.f32 %v662, %v735
      %v739 = vxor.u32 %v738, 2147483648
      %v740 = vmul.f32 %v739, 1.442695
      %v741 = vpow.pop %v740
      %v742 = vadd.f32 %v741, 1.0
      %v743 = vrcp.pop %v742
      %v744 = vmul.f32 1.0, %v743
      %v745 = vtanh.pop %v738
      %v746 = vmul.f32 %v744, %v619
      %748 = vrot.lane.b32.xlu0 %v745, 64
      %v749 = vpop.permute.xlu0 %748
      %v751 = vmul.f32 %v744, %v749
      %753 = vrot.lane.b32.xlu0 %v751, 32
      %v754 = vpop.permute.xlu0 %753
      %v756 = vadd.f32 %v746, %v754
      %v757 = vtanh.pop %v756
      %759 = vrot.lane.b32.xlu0 %v757, 64
      %v760 = vpop.permute.xlu0 %759
      %v762 = vmul.f32 %v744, %v760
      %v763 = vstv %s660
      %vm764 = vcmp.lt.s32.totalorder %v763, %v40
      %v765 = vsel %vm764, 1, 0
      %766 = vset.pattern.permute.xlu0 0
      %767 = vperm.xlu0 %766, %v765
      %v768 = vpop.permute.xlu0 %767
      %vm769 = vcmp.eq.s32.totalorder %v768, 1
      %v770 = vsel %vm769, %v762, %v618
      %v771 = vsel %vm769, %v756, %v619
      %v772 = vsel %vm769, %v762, 0.0
      %v775 = vunpack.c.l.s4 1966171168
      %v776 = vunpack.c.0.s8 %v775
      %v777 = vlaneseq
      %v778 = vshrl.u32 %v777, 7
      %v779 = vsub.s32 %v776, %v778
      %v780 = vrot.slane %v772, %v779
      %v781 = vcombine.high %v780, %v780
      %v783 = vunpack.c.l.s4 1966171168
      %v784 = vunpack.c.0.s8 %v783
      %v785 = vlaneseq
      %v786 = vshrl.u32 %v785, 7
      %v787 = vsub.s32 %v784, %v786
      %v788 = vrot.slane %v780, %v787
      %v790 = vunpack.c.l.s4 1966171168
      %v791 = vunpack.c.0.s8 %v790
      %v792 = vlaneseq
      %v793 = vshrl.u32 %v792, 7
      %v794 = vsub.s32 %v791, %v793
      %v795 = vrot.slane %v781, %v794
      %v796 = vlaneseq
      %v797 = vshrl.u32 %v796, 7
      %v798 = vsub.s32 0, %v797
      %v799 = vrot.slane %v788, %v798
      %v800 = vlaneseq
      %v801 = vshrl.u32 %v800, 7
      %v802 = vsub.s32 0, %v801
      %v803 = vrot.slane %v795, %v802
      %804 = vrot.lane.b32.xlu0 %v799, 32
      %v805 = vpop.permute.xlu0 %804
      %806 = vrot.lane.b32.xlu0 %v803, 32
      %v807 = vpop.permute.xlu0 %806
      %810 = vst.msk [vmem:[#allocation6 + $0x4] sm:$0x1] %vm201, %v805
      %811 = vst.msk [vmem:[#allocation6 + $0xc] sm:$0x1] %vm201, %v807
      %s812 = sadd.s32 %s20, 5
      %s813 = scalar_lea.vmem %s1, 10
      %v814 = vld [vmem:[%s813] sm:$0x3]
      %816 = vrot.lane.b32.xlu0 %v770, 32
      %v817 = vpop.permute.xlu0 %816
      %v818 = vsel %vm48, %v817, 0
      %820 = vmatprep.subr.mxu0 0.0
      %821 = vmatpush1.msra.mxu0 0.0
      %822 = vmatprep.subr.mxu0 0.0
      %823 = vmatpush1.msra.mxu0 0.0
      %824 = vmatprep.subr.mxu0 0.0
      %825 = vmatpush1.msra.mxu0 0.0
      %826 = vmatprep.subr.mxu0 0.0
      %827 = vmatpush1.msra.mxu0 0.0
      %828 = vmatprep.subr.mxu0 0.0
      %829 = vmatpush1.msra.mxu0 0.0
      %830 = vmatprep.subr.mxu0 0.0
      %831 = vmatpush1.msra.mxu0 0.0
      %832 = vmatprep.subr.mxu0 0.0
      %833 = vmatpush1.msra.mxu0 0.0
      %834 = vmatprep.subr.mxu0 0.0
      %835 = vmatpush1.msra.mxu0 0.0
      %836 = vmatprep.subr.mxu0 0.0
      %837 = vmatpush1.msra.mxu0 0.0
      %838 = vmatprep.subr.mxu0 0.0
      %839 = vmatpush1.msra.mxu0 0.0
      %840 = vmatprep.subr.mxu0 0.0
      %841 = vmatpush1.msra.mxu0 0.0
      %842 = vmatprep.subr.mxu0 0.0
      %843 = vmatpush1.msra.mxu0 0.0
      %844 = vmatprep.subr.mxu0 0.0
      %845 = vmatpush1.msra.mxu0 %v44
      %846 = vmatprep.subr.mxu0 0.0
      %847 = vmatpush1.msra.mxu0 %v43
      %848 = vmatprep.subr.mxu0 0.0
      %849 = vmatpush1.msra.mxu0 %v42
      %850 = vmatprep.subr.mxu0 0.0
      %851 = vmatpush1.msra.mxu0 %v41
      %852 = vmatprep.subr.mxu0 0.0
      %853 = vmatpush2.msra.mxu0 0.0
      %854 = vmatprep.subr.mxu0 0.0
      %855 = vmatpush2.msra.mxu0 0.0
      %856 = vmatprep.subr.mxu0 0.0
      %857 = vmatpush2.msra.mxu0 0.0
      %858 = vmatprep.subr.mxu0 0.0
      %859 = vmatpush2.msra.mxu0 0.0
      %860 = vmatprep.subr.mxu0 0.0
      %861 = vmatpush2.msra.mxu0 0.0
      %862 = vmatprep.subr.mxu0 0.0
      %863 = vmatpush2.msra.mxu0 0.0
      %864 = vmatprep.subr.mxu0 0.0
      %865 = vmatpush2.msra.mxu0 0.0
      %866 = vmatprep.subr.mxu0 0.0
      %867 = vmatpush2.msra.mxu0 0.0
      %868 = vmatprep.subr.mxu0 0.0
      %869 = vmatpush2.msra.mxu0 0.0
      %870 = vmatprep.subr.mxu0 0.0
      %871 = vmatpush2.msra.mxu0 0.0
      %872 = vmatprep.subr.mxu0 0.0
      %873 = vmatpush2.msra.mxu0 0.0
      %874 = vmatprep.subr.mxu0 0.0
      %875 = vmatpush2.msra.mxu0 0.0
      %876 = vmatprep.subr.mxu0 0.0
      %877 = vmatpush2.msra.mxu0 0.0
      %878 = vmatprep.subr.mxu0 0.0
      %879 = vmatpush2.msra.mxu0 0.0
      %880 = vmatprep.subr.mxu0 0.0
      %881 = vmatpush2.msra.mxu0 0.0
      %882 = vmatprep.subr.mxu0 0.0
      %883 = vmatpush2.msra.mxu0 0.0
      %884 = vmatprep.mubr.f32.mxu0 0.0
      %885 = vmatmul.mubr.f32.gmra.mxu0 %v818
      %v886 = vpop.f32.mrf.mxu0
      %v887 = vadd.f32 0.0, %v886
      %v888 = vpop.f32.mrf.mxu0
      %889 = vdwg.mxu0
      %v890 = vadd.f32 %v814, %v887
      %v891 = vxor.u32 %v890, 2147483648
      %v892 = vmul.f32 %v891, 1.442695
      %v893 = vpow.pop %v892
      %v894 = vadd.f32 %v893, 1.0
      %v895 = vrcp.pop %v894
      %v896 = vmul.f32 1.0, %v895
      %v897 = vtanh.pop %v890
      %v898 = vmul.f32 %v896, %v771
      %900 = vrot.lane.b32.xlu0 %v897, 64
      %v901 = vpop.permute.xlu0 %900
      %v903 = vmul.f32 %v896, %v901
      %905 = vrot.lane.b32.xlu0 %v903, 32
      %v906 = vpop.permute.xlu0 %905
      %v908 = vadd.f32 %v898, %v906
      %v909 = vtanh.pop %v908
      %911 = vrot.lane.b32.xlu0 %v909, 64
      %v912 = vpop.permute.xlu0 %911
      %v914 = vmul.f32 %v896, %v912
      %v915 = vstv %s812
      %vm916 = vcmp.lt.s32.totalorder %v915, %v40
      %v917 = vsel %vm916, 1, 0
      %918 = vset.pattern.permute.xlu0 0
      %919 = vperm.xlu0 %918, %v917
      %v920 = vpop.permute.xlu0 %919
      %vm921 = vcmp.eq.s32.totalorder %v920, 1
      %v922 = vsel %vm921, %v914, %v770
      %v923 = vsel %vm921, %v908, %v771
      %v924 = vsel %vm921, %v914, 0.0
      %v927 = vunpack.c.l.s4 1966171168
      %v928 = vunpack.c.0.s8 %v927
      %v929 = vlaneseq
      %v930 = vshrl.u32 %v929, 7
      %v931 = vsub.s32 %v928, %v930
      %v932 = vrot.slane %v924, %v931
      %v933 = vcombine.high %v932, %v932
      %v935 = vunpack.c.l.s4 1966171168
      %v936 = vunpack.c.0.s8 %v935
      %v937 = vlaneseq
      %v938 = vshrl.u32 %v937, 7
      %v939 = vsub.s32 %v936, %v938
      %v940 = vrot.slane %v932, %v939
      %v942 = vunpack.c.l.s4 1966171168
      %v943 = vunpack.c.0.s8 %v942
      %v944 = vlaneseq
      %v945 = vshrl.u32 %v944, 7
      %v946 = vsub.s32 %v943, %v945
      %v947 = vrot.slane %v933, %v946
      %v948 = vlaneseq
      %v949 = vshrl.u32 %v948, 7
      %v950 = vsub.s32 0, %v949
      %v951 = vrot.slane %v940, %v950
      %v952 = vlaneseq
      %v953 = vshrl.u32 %v952, 7
      %v954 = vsub.s32 0, %v953
      %v955 = vrot.slane %v947, %v954
      %956 = vrot.lane.b32.xlu0 %v951, 32
      %v957 = vpop.permute.xlu0 %956
      %958 = vrot.lane.b32.xlu0 %v955, 32
      %v959 = vpop.permute.xlu0 %958
      %962 = vst.msk [vmem:[#allocation6 + $0x5] sm:$0x1] %vm201, %v957
      %963 = vst.msk [vmem:[#allocation6 + $0xd] sm:$0x1] %vm201, %v959
      %s964 = sadd.s32 %s20, 6
      %s965 = scalar_lea.vmem %s1, 12
      %v966 = vld [vmem:[%s965] sm:$0x3]
      %968 = vrot.lane.b32.xlu0 %v922, 32
      %v969 = vpop.permute.xlu0 %968
      %v970 = vsel %vm48, %v969, 0
      %972 = vmatprep.subr.mxu0 0.0
      %973 = vmatpush1.msra.mxu0 0.0
      %974 = vmatprep.subr.mxu0 0.0
      %975 = vmatpush1.msra.mxu0 0.0
      %976 = vmatprep.subr.mxu0 0.0
      %977 = vmatpush1.msra.mxu0 0.0
      %978 = vmatprep.subr.mxu0 0.0
      %979 = vmatpush1.msra.mxu0 0.0
      %980 = vmatprep.subr.mxu0 0.0
      %981 = vmatpush1.msra.mxu0 0.0
      %982 = vmatprep.subr.mxu0 0.0
      %983 = vmatpush1.msra.mxu0 0.0
      %984 = vmatprep.subr.mxu0 0.0
      %985 = vmatpush1.msra.mxu0 0.0
      %986 = vmatprep.subr.mxu0 0.0
      %987 = vmatpush1.msra.mxu0 0.0
      %988 = vmatprep.subr.mxu0 0.0
      %989 = vmatpush1.msra.mxu0 0.0
      %990 = vmatprep.subr.mxu0 0.0
      %991 = vmatpush1.msra.mxu0 0.0
      %992 = vmatprep.subr.mxu0 0.0
      %993 = vmatpush1.msra.mxu0 0.0
      %994 = vmatprep.subr.mxu0 0.0
      %995 = vmatpush1.msra.mxu0 0.0
      %996 = vmatprep.subr.mxu0 0.0
      %997 = vmatpush1.msra.mxu0 %v44
      %998 = vmatprep.subr.mxu0 0.0
      %999 = vmatpush1.msra.mxu0 %v43
      %1000 = vmatprep.subr.mxu0 0.0
      %1001 = vmatpush1.msra.mxu0 %v42
      %1002 = vmatprep.subr.mxu0 0.0
      %1003 = vmatpush1.msra.mxu0 %v41
      %1004 = vmatprep.subr.mxu0 0.0
      %1005 = vmatpush2.msra.mxu0 0.0
      %1006 = vmatprep.subr.mxu0 0.0
      %1007 = vmatpush2.msra.mxu0 0.0
      %1008 = vmatprep.subr.mxu0 0.0
      %1009 = vmatpush2.msra.mxu0 0.0
      %1010 = vmatprep.subr.mxu0 0.0
      %1011 = vmatpush2.msra.mxu0 0.0
      %1012 = vmatprep.subr.mxu0 0.0
      %1013 = vmatpush2.msra.mxu0 0.0
      %1014 = vmatprep.subr.mxu0 0.0
      %1015 = vmatpush2.msra.mxu0 0.0
      %1016 = vmatprep.subr.mxu0 0.0
      %1017 = vmatpush2.msra.mxu0 0.0
      %1018 = vmatprep.subr.mxu0 0.0
      %1019 = vmatpush2.msra.mxu0 0.0
      %1020 = vmatprep.subr.mxu0 0.0
      %1021 = vmatpush2.msra.mxu0 0.0
      %1022 = vmatprep.subr.mxu0 0.0
      %1023 = vmatpush2.msra.mxu0 0.0
      %1024 = vmatprep.subr.mxu0 0.0
      %1025 = vmatpush2.msra.mxu0 0.0
      %1026 = vmatprep.subr.mxu0 0.0
      %1027 = vmatpush2.msra.mxu0 0.0
      %1028 = vmatprep.subr.mxu0 0.0
      %1029 = vmatpush2.msra.mxu0 0.0
      %1030 = vmatprep.subr.mxu0 0.0
      %1031 = vmatpush2.msra.mxu0 0.0
      %1032 = vmatprep.subr.mxu0 0.0
      %1033 = vmatpush2.msra.mxu0 0.0
      %1034 = vmatprep.subr.mxu0 0.0
      %1035 = vmatpush2.msra.mxu0 0.0
      %1036 = vmatprep.mubr.f32.mxu0 0.0
      %1037 = vmatmul.mubr.f32.gmra.mxu0 %v970
      %v1038 = vpop.f32.mrf.mxu0
      %v1039 = vadd.f32 0.0, %v1038
      %v1040 = vpop.f32.mrf.mxu0
      %1041 = vdwg.mxu0
      %v1042 = vadd.f32 %v966, %v1039
      %v1043 = vxor.u32 %v1042, 2147483648
      %v1044 = vmul.f32 %v1043, 1.442695
      %v1045 = vpow.pop %v1044
      %v1046 = vadd.f32 %v1045, 1.0
      %v1047 = vrcp.pop %v1046
      %v1048 = vmul.f32 1.0, %v1047
      %v1049 = vtanh.pop %v1042
      %v1050 = vmul.f32 %v1048, %v923
      %1052 = vrot.lane.b32.xlu0 %v1049, 64
      %v1053 = vpop.permute.xlu0 %1052
      %v1055 = vmul.f32 %v1048, %v1053
      %1057 = vrot.lane.b32.xlu0 %v1055, 32
      %v1058 = vpop.permute.xlu0 %1057
      %v1060 = vadd.f32 %v1050, %v1058
      %v1061 = vtanh.pop %v1060
      %1063 = vrot.lane.b32.xlu0 %v1061, 64
      %v1064 = vpop.permute.xlu0 %1063
      %v1066 = vmul.f32 %v1048, %v1064
      %v1067 = vstv %s964
      %vm1068 = vcmp.lt.s32.totalorder %v1067, %v40
      %v1069 = vsel %vm1068, 1, 0
      %1070 = vset.pattern.permute.xlu0 0
      %1071 = vperm.xlu0 %1070, %v1069
      %v1072 = vpop.permute.xlu0 %1071
      %vm1073 = vcmp.eq.s32.totalorder %v1072, 1
      %v1074 = vsel %vm1073, %v1066, %v922
      %v1075 = vsel %vm1073, %v1060, %v923
      %v1076 = vsel %vm1073, %v1066, 0.0
      %v1079 = vunpack.c.l.s4 1966171168
      %v1080 = vunpack.c.0.s8 %v1079
      %v1081 = vlaneseq
      %v1082 = vshrl.u32 %v1081, 7
      %v1083 = vsub.s32 %v1080, %v1082
      %v1084 = vrot.slane %v1076, %v1083
      %v1085 = vcombine.high %v1084, %v1084
      %v1087 = vunpack.c.l.s4 1966171168
      %v1088 = vunpack.c.0.s8 %v1087
      %v1089 = vlaneseq
      %v1090 = vshrl.u32 %v1089, 7
      %v1091 = vsub.s32 %v1088, %v1090
      %v1092 = vrot.slane %v1084, %v1091
      %v1094 = vunpack.c.l.s4 1966171168
      %v1095 = vunpack.c.0.s8 %v1094
      %v1096 = vlaneseq
      %v1097 = vshrl.u32 %v1096, 7
      %v1098 = vsub.s32 %v1095, %v1097
      %v1099 = vrot.slane %v1085, %v1098
      %v1100 = vlaneseq
      %v1101 = vshrl.u32 %v1100, 7
      %v1102 = vsub.s32 0, %v1101
      %v1103 = vrot.slane %v1092, %v1102
      %v1104 = vlaneseq
      %v1105 = vshrl.u32 %v1104, 7
      %v1106 = vsub.s32 0, %v1105
      %v1107 = vrot.slane %v1099, %v1106
      %1108 = vrot.lane.b32.xlu0 %v1103, 32
      %v1109 = vpop.permute.xlu0 %1108
      %1110 = vrot.lane.b32.xlu0 %v1107, 32
      %v1111 = vpop.permute.xlu0 %1110
      %1114 = vst.msk [vmem:[#allocation6 + $0x6] sm:$0x1] %vm201, %v1109
      %1115 = vst.msk [vmem:[#allocation6 + $0xe] sm:$0x1] %vm201, %v1111
      %s1116 = sadd.s32 %s20, 7
      %s1117 = scalar_lea.vmem %s1, 14
      %v1118 = vld [vmem:[%s1117] sm:$0x3]
      %1120 = vrot.lane.b32.xlu0 %v1074, 32
      %v1121 = vpop.permute.xlu0 %1120
      %v1122 = vsel %vm48, %v1121, 0
      %1124 = vmatprep.subr.mxu0 0.0
      %1125 = vmatpush1.msra.mxu0 0.0
      %1126 = vmatprep.subr.mxu0 0.0
      %1127 = vmatpush1.msra.mxu0 0.0
      %1128 = vmatprep.subr.mxu0 0.0
      %1129 = vmatpush1.msra.mxu0 0.0
      %1130 = vmatprep.subr.mxu0 0.0
      %1131 = vmatpush1.msra.mxu0 0.0
      %1132 = vmatprep.subr.mxu0 0.0
      %1133 = vmatpush1.msra.mxu0 0.0
      %1134 = vmatprep.subr.mxu0 0.0
      %1135 = vmatpush1.msra.mxu0 0.0
      %1136 = vmatprep.subr.mxu0 0.0
      %1137 = vmatpush1.msra.mxu0 0.0
      %1138 = vmatprep.subr.mxu0 0.0
      %1139 = vmatpush1.msra.mxu0 0.0
      %1140 = vmatprep.subr.mxu0 0.0
      %1141 = vmatpush1.msra.mxu0 0.0
      %1142 = vmatprep.subr.mxu0 0.0
      %1143 = vmatpush1.msra.mxu0 0.0
      %1144 = vmatprep.subr.mxu0 0.0
      %1145 = vmatpush1.msra.mxu0 0.0
      %1146 = vmatprep.subr.mxu0 0.0
      %1147 = vmatpush1.msra.mxu0 0.0
      %1148 = vmatprep.subr.mxu0 0.0
      %1149 = vmatpush1.msra.mxu0 %v44
      %1150 = vmatprep.subr.mxu0 0.0
      %1151 = vmatpush1.msra.mxu0 %v43
      %1152 = vmatprep.subr.mxu0 0.0
      %1153 = vmatpush1.msra.mxu0 %v42
      %1154 = vmatprep.subr.mxu0 0.0
      %1155 = vmatpush1.msra.mxu0 %v41
      %1156 = vmatprep.subr.mxu0 0.0
      %1157 = vmatpush2.msra.mxu0 0.0
      %1158 = vmatprep.subr.mxu0 0.0
      %1159 = vmatpush2.msra.mxu0 0.0
      %1160 = vmatprep.subr.mxu0 0.0
      %1161 = vmatpush2.msra.mxu0 0.0
      %1162 = vmatprep.subr.mxu0 0.0
      %1163 = vmatpush2.msra.mxu0 0.0
      %1164 = vmatprep.subr.mxu0 0.0
      %1165 = vmatpush2.msra.mxu0 0.0
      %1166 = vmatprep.subr.mxu0 0.0
      %1167 = vmatpush2.msra.mxu0 0.0
      %1168 = vmatprep.subr.mxu0 0.0
      %1169 = vmatpush2.msra.mxu0 0.0
      %1170 = vmatprep.subr.mxu0 0.0
      %1171 = vmatpush2.msra.mxu0 0.0
      %1172 = vmatprep.subr.mxu0 0.0
      %1173 = vmatpush2.msra.mxu0 0.0
      %1174 = vmatprep.subr.mxu0 0.0
      %1175 = vmatpush2.msra.mxu0 0.0
      %1176 = vmatprep.subr.mxu0 0.0
      %1177 = vmatpush2.msra.mxu0 0.0
      %1178 = vmatprep.subr.mxu0 0.0
      %1179 = vmatpush2.msra.mxu0 0.0
      %1180 = vmatprep.subr.mxu0 0.0
      %1181 = vmatpush2.msra.mxu0 0.0
      %1182 = vmatprep.subr.mxu0 0.0
      %1183 = vmatpush2.msra.mxu0 0.0
      %1184 = vmatprep.subr.mxu0 0.0
      %1185 = vmatpush2.msra.mxu0 0.0
      %1186 = vmatprep.subr.mxu0 0.0
      %1187 = vmatpush2.msra.mxu0 0.0
      %1188 = vmatprep.mubr.f32.mxu0 0.0
      %1189 = vmatmul.mubr.f32.gmra.mxu0 %v1122
      %v1190 = vpop.f32.mrf.mxu0
      %v1191 = vadd.f32 0.0, %v1190
      %v1192 = vpop.f32.mrf.mxu0
      %1193 = vdwg.mxu0
      %v1194 = vadd.f32 %v1118, %v1191
      %v1195 = vxor.u32 %v1194, 2147483648
      %v1196 = vmul.f32 %v1195, 1.442695
      %v1197 = vpow.pop %v1196
      %v1198 = vadd.f32 %v1197, 1.0
      %v1199 = vrcp.pop %v1198
      %v1200 = vmul.f32 1.0, %v1199
      %v1201 = vtanh.pop %v1194
      %v1202 = vmul.f32 %v1200, %v1075
      %1204 = vrot.lane.b32.xlu0 %v1201, 64
      %v1205 = vpop.permute.xlu0 %1204
      %v1207 = vmul.f32 %v1200, %v1205
      %1209 = vrot.lane.b32.xlu0 %v1207, 32
      %v1210 = vpop.permute.xlu0 %1209
      %v1212 = vadd.f32 %v1202, %v1210
      %v1213 = vtanh.pop %v1212
      %1215 = vrot.lane.b32.xlu0 %v1213, 64
      %v1216 = vpop.permute.xlu0 %1215
      %v1218 = vmul.f32 %v1200, %v1216
      %v1219 = vstv %s1116
      %vm1220 = vcmp.lt.s32.totalorder %v1219, %v40
      %v1221 = vsel %vm1220, 1, 0
      %1222 = vset.pattern.permute.xlu0 0
      %1223 = vperm.xlu0 %1222, %v1221
      %v1224 = vpop.permute.xlu0 %1223
      %vm1225 = vcmp.eq.s32.totalorder %v1224, 1
      %v1226 = vsel %vm1225, %v1218, %v1074
      %v1227 = vsel %vm1225, %v1212, %v1075
      %v1228 = vsel %vm1225, %v1218, 0.0
      %v1231 = vunpack.c.l.s4 1966171168
      %v1232 = vunpack.c.0.s8 %v1231
      %v1233 = vlaneseq
      %v1234 = vshrl.u32 %v1233, 7
      %v1235 = vsub.s32 %v1232, %v1234
      %v1236 = vrot.slane %v1228, %v1235
      %v1237 = vcombine.high %v1236, %v1236
      %v1239 = vunpack.c.l.s4 1966171168
      %v1240 = vunpack.c.0.s8 %v1239
      %v1241 = vlaneseq
      %v1242 = vshrl.u32 %v1241, 7
      %v1243 = vsub.s32 %v1240, %v1242
      %v1244 = vrot.slane %v1236, %v1243
      %v1246 = vunpack.c.l.s4 1966171168
      %v1247 = vunpack.c.0.s8 %v1246
      %v1248 = vlaneseq
      %v1249 = vshrl.u32 %v1248, 7
      %v1250 = vsub.s32 %v1247, %v1249
      %v1251 = vrot.slane %v1237, %v1250
      %v1252 = vlaneseq
      %v1253 = vshrl.u32 %v1252, 7
      %v1254 = vsub.s32 0, %v1253
      %v1255 = vrot.slane %v1244, %v1254
      %v1256 = vlaneseq
      %v1257 = vshrl.u32 %v1256, 7
      %v1258 = vsub.s32 0, %v1257
      %v1259 = vrot.slane %v1251, %v1258
      %1260 = vrot.lane.b32.xlu0 %v1255, 32
      %v1261 = vpop.permute.xlu0 %1260
      %1262 = vrot.lane.b32.xlu0 %v1259, 32
      %v1263 = vpop.permute.xlu0 %1262
      %1266 = vst.msk [vmem:[#allocation6 + $0x7] sm:$0x1] %vm201, %v1261
      %1267 = vst.msk [vmem:[#allocation6 + $0xf] sm:$0x1] %vm201, %v1263
      %1269 = vrot.lane.b32.xlu0 %v1226, 32
      %v1270 = vpop.permute.xlu0 %1269
      %vm1272 = vcmask 254976
      %1273 = vst.msk [vmem:[#allocation2] sm:$0x3] %vm1272, %v1270
      %1275 = vrot.lane.b32.xlu0 %v1227, 96
      %v1276 = vpop.permute.xlu0 %1275
      %1278 = vst.msk [vmem:[#allocation3] sm:$0x3] %vm1272, %v1276
    $region25: #{rnn_encoder_forward.1} parent=1 // pred_fallthru
      _
    // Predicated region
    $region26: #{rnn_encoder_forward.1} parent=1 // pred_check
      %p1279 = pneg %p22
    $region27: #{rnn_encoder_forward.1} parent=1 // pred_check_branch
      %1281 = sbr.rel (%p1279) target = $region29
    $region28: #{rnn_encoder_forward.1} parent=1 // pred_region
      %v1282 = vld [vmem:[#allocation2] sm:$0x3]
      %vm1283 = vcmask 254976
      %1284 = vst.msk [vmem:[#allocation8] sm:$0x3] %vm1283, %v1282
    $region29: #{rnn_encoder_forward.1} parent=1 // pred_fallthru
      _
    // Predicated region
    $region30: #{rnn_encoder_forward.1} parent=1 // pred_check
      _
    $region31: #{rnn_encoder_forward.1} parent=1 // pred_check_branch
      %1286 = sbr.rel (0) target = $region33
    $region32: #{rnn_encoder_forward.1} parent=1 // pred_region
      %s1288 = ssub.s32 256, 256
      %1289 = vsyncadd [#allocation7], %s1288
      %s1290 = sshll.u32 [#allocation6], 4
      %s1291 = int_to_ptr.vmem [resolvable:$true] %s1290
      %1296 = dma.vmem_to_hbm [thread:$0]  %s1291, 256, %s4, [#allocation7], 128, 128, 8
    $region33: #{rnn_encoder_forward.1} parent=1 // pred_fallthru
      _
    // Predicated region
    $region34: #{rnn_encoder_forward.1} parent=1 // pred_check
      _
    $region35: #{rnn_encoder_forward.1} parent=1 // pred_check_branch
      %1298 = sbr.rel (0) target = $region37
    $region36: #{rnn_encoder_forward.1} parent=1 // pred_region
      %s1300 = ssub.s32 32, 32
      %1301 = vsyncadd [#allocation9], %s1300
      %s1303 = sshll.u32 [#allocation8], 4
      %s1304 = int_to_ptr.vmem [resolvable:$true] %s1303
      %1306 = dma.vmem_to_hbm [thread:$0]  %s1304, 32, %s5, [#allocation9]
    $region37: #{rnn_encoder_forward.1} parent=1 // pred_fallthru
      _
    // Predicated region
    $region38: #{rnn_encoder_forward.1} parent=1 // pred_check
      _
    $region39: #{rnn_encoder_forward.1} parent=1 // pred_check_branch
      %1308 = sbr.rel (0) target = $region41
    $region40: #{rnn_encoder_forward.1} parent=1 // pred_region
      %1309 = dma.done [#allocation7], 256
    $region41: #{rnn_encoder_forward.1} parent=1 // pred_fallthru
      _
    // Predicated region
    $region42: #{rnn_encoder_forward.1} parent=1 // pred_check
      _
    $region43: #{rnn_encoder_forward.1} parent=1 // pred_check_branch
      %1311 = sbr.rel (0) target = $region45
    $region44: #{rnn_encoder_forward.1} parent=1 // pred_region
      %1312 = dma.done [#allocation9], 32
    $region45: #{rnn_encoder_forward.1} parent=1 // pred_fallthru
      _
    %1313 = vsyncpa [#allocation7], 1
    %1314 = vsyncpa [#allocation9], 1

</llo_original>
